<compile_context>
chip_gen: v5e
topology: v5e:2x2
jax: 0.10.0
libtpu: 0.0.40
codegen_flags: <defaults>
</compile_context>

<pallas_src>
import jax
import jax.numpy as jnp
from jax import lax
from jax.experimental import pallas as pl
from jax.experimental.pallas import tpu as pltpu

_MiB = 1024 * 1024


def _pooled_heads_kernel(h_ref, m_ref, w1_ref, b1_ref, w2_ref, b2_ref,
                         out_ref, acc_ref, msum_ref):
    """Streaming masked-mean pooling + fused reward/confidence heads.

    grid = (ceil(B/tB), ceil(S/tS)); axis 1 (sequence) is the reduction axis.
    """
    j = pl.program_id(1)

    @pl.when(j == 0)
    def _init():
        acc_ref[...] = jnp.zeros_like(acc_ref)
        msum_ref[...] = jnp.zeros_like(msum_ref)

    # last_hidden tile in its native dtype (bf16/f32); cast per tile, acc in f32.
    h = h_ref[...].astype(jnp.float32)          # [tB, tS, H]
    m = m_ref[...]                              # [tB, tS, 1] f32 (0 in padded tail)
    # where-guard: the last seq tile (and partial batch blocks) may contain
    # undefined VMEM because last_hidden is NOT padded in HBM; mask==0 there.
    hm = jnp.where(m > 0.0, h * m, 0.0)         # mask multiply = lane broadcast
    acc_ref[...] += jnp.sum(hm, axis=1)         # [tB, H]  sum_s h*m
    msum_ref[...] += jnp.sum(m, axis=1)         # [tB, 1]  sum_s m

    @pl.when(j == pl.num_programs(1) - 1)
    def _finalize():
        # NOTE: an all-zero mask row divides by zero (NaN/Inf), matching the
        # un-clamped PyTorch module.
        pooled = acc_ref[...] / msum_ref[...]   # [tB, H]
        hid = jnp.dot(pooled, w1_ref[...],
                      preferred_element_type=jnp.float32) + b1_ref[...]   # [tB, 2D]
        hid = jnp.maximum(hid, 0.0)             # ReLU; Dropout(0.1) = identity (eval)
        out = jnp.dot(hid, w2_ref[...],
                      preferred_element_type=jnp.float32) + b2_ref[...]   # [tB, 2]
        col = lax.broadcasted_iota(jnp.int32, out.shape, 1)
        # col 0: raw reward, col 1: sigmoid(confidence logit)
        out_ref[...] = jnp.where(col == 0, out, jax.nn.sigmoid(out))


def _device_vmem_budget():
    """(vmem_limit_bytes, per_stream_tile_bytes) per TPU generation."""
    kind = ""
    try:
        kind = jax.devices()[0].device_kind.lower()
    except Exception:
        pass
    if "v7" in kind:                                   # 64 MiB physical: headroom
        return 48 * _MiB, 12 * _MiB
    if any(v in kind for v in ("v3", "v4", "v5", "v6")):  # 128 MiB physical
        return 100 * _MiB, 24 * _MiB
    return 48 * _MiB, 12 * _MiB                        # unknown: be conservative


def reward_model_forward(last_hidden, attention_mask, params, *,
                         return_conf=True, seq_tile=None,
                         seq_tile_bytes=None, vmem_limit_bytes=None):
    """Pallas-backed forward of pooling + reward/confidence heads.

    last_hidden:    [B, S, H] backbone final hidden states (native dtype, e.g. bf16)
    attention_mask: [B, S] (any numeric/bool dtype) or None (plain mean over seq)
    params: dict with w1r [H,512], b1r [1,512], w2r [512,1], b2r [1,1],
                      w1c [H,512], b1c [1,512], w2c [512,1], b2c [1,1]
    returns (reward [B,1], confidence [B,1])  (or just reward if not return_conf)
    """
    B, S, H = last_hidden.shape
    D = params["w1r"].shape[1]
    f32 = jnp.float32

    default_limit, default_tile_bytes = _device_vmem_budget()
    if vmem_limit_bytes is None:
        vmem_limit_bytes = default_limit
    if seq_tile_bytes is None:
        seq_tile_bytes = default_tile_bytes

    # ---- mask shaped [B, S, 1] so the in-kernel multiply is a lane broadcast
    if attention_mask is None:
        mask3 = jnp.ones((B, S, 1), f32)
    else:
        mask3 = attention_mask.astype(f32)[:, :, None]

    # ---- fuse the two heads: one [H, 2D] first layer + block-diagonal [2D, 2]
    w1 = jnp.concatenate([params["w1r"].astype(f32), params["w1c"].astype(f32)], axis=1)
    b1 = jnp.concatenate([params["b1r"].astype(f32), params["b1c"].astype(f32)], axis=1)
    w2 = jnp.zeros((2 * D, 2), f32)
    w2 = w2.at[:D, 0].set(params["w2r"].astype(f32)[:, 0])
    w2 = w2.at[D:, 1].set(params["w2c"].astype(f32)[:, 0])
    b2 = jnp.concatenate([params["b2r"].astype(f32), params["b2c"].astype(f32)], axis=1)

    # ---- tile sizes --------------------------------------------------------
    tB = 8 if B > 8 else B            # >=2 batch blocks whenever B > 8 (v7x 2 TCs)
    itemsize = jnp.dtype(last_hidden.dtype).itemsize
    sub = max(8, 32 // itemsize)      # sublane packing: 8 (f32), 16 (bf16), 32 (int8)
    if seq_tile is None:
        tS = seq_tile_bytes // max(1, tB * H * itemsize)
    else:
        tS = int(seq_tile)
    tS = max(sub, (tS // sub) * sub)
    if tS >= S:
        tS = S                        # whole sequence in one block
    grid = (pl.cdiv(B, tB), pl.cdiv(S, tS))

    # Pad ONLY the tiny mask; its zero tail masks the undefined VMEM of the
    # partial last sequence tile.  last_hidden itself is never padded/copied.
    S_pad = grid[1] * tS
    if S_pad != S:
        mask3 = jnp.pad(mask3, ((0, 0), (0, S_pad - S), (0, 0)))

    out_shape = jax.ShapeDtypeStruct((B, 2), f32)

    def _const_spec(shape, single_buffer):
        index_map = lambda i, j: (0,) * len(shape)
        if single_buffer:
            # resident weights: no double buffering (frees VMEM, esp. on v7x)
            return pl.BlockSpec(shape, index_map, pipeline_mode=pl.Buffered(1))
        return pl.BlockSpec(shape, index_map)

    def _call(single_buffer_weights):
        grid_spec = pltpu.PrefetchScalarGridSpec(
            num_scalar_prefetch=0,
            grid=grid,
            in_specs=[
                pl.BlockSpec((tB, tS, H), lambda i, j: (i, j, 0)),   # last_hidden
                pl.BlockSpec((tB, tS, 1), lambda i, j: (i, j, 0)),   # mask
                _const_spec((H, 2 * D), single_buffer_weights),      # fused W1
                _const_spec((1, 2 * D), single_buffer_weights),      # fused b1
                _const_spec((2 * D, 2), single_buffer_weights),      # block-diag W2
                _const_spec((1, 2), single_buffer_weights),          # fused b2
            ],
            out_specs=pl.BlockSpec((tB, 2), lambda i, j: (i, 0)),    # [reward, conf]
            scratch_shapes=[
                pltpu.VMEM((tB, H), jnp.float32),                    # acc: sum_s h*m
                pltpu.VMEM((tB, 1), jnp.float32),                    # msum: sum_s m
            ],
        )
        return pl.pallas_call(
            _pooled_heads_kernel,
            out_shape=out_shape,
            grid_spec=grid_spec,
            compiler_params=pltpu.CompilerParams(
                dimension_semantics=("parallel", "arbitrary"),
                vmem_limit_bytes=int(vmem_limit_bytes),
            ),
        )(last_hidden, mask3, w1, b1, w2, b2)

    try:
        out = _call(True)
    except Exception:
        # pipeline_mode=pl.Buffered(1) not supported here -> default buffering
        out = _call(False)

    reward = out[:, 0:1]
    if return_conf:
        return reward, out[:, 1:2]
    return reward


def init_params(key, hidden_size, head_dim=512):
    """Deterministic init of the two head MLPs (shapes as in the nn.Module)."""
    ks = jax.random.split(key, 8)
    scale1 = 1.0 / jnp.sqrt(hidden_size)
    scale2 = 1.0 / jnp.sqrt(head_dim)
    return {
        "w1r": jax.random.normal(ks[0], (hidden_size, head_dim), jnp.float32) * scale1,
        "b1r": jax.random.normal(ks[1], (1, head_dim), jnp.float32) * 0.01,
        "w2r": jax.random.normal(ks[2], (head_dim, 1), jnp.float32) * scale2,
        "b2r": jax.random.normal(ks[3], (1, 1), jnp.float32) * 0.01,
        "w1c": jax.random.normal(ks[4], (hidden_size, head_dim), jnp.float32) * scale1,
        "b1c": jax.random.normal(ks[5], (1, head_dim), jnp.float32) * 0.01,
        "w2c": jax.random.normal(ks[6], (head_dim, 1), jnp.float32) * scale2,
        "b2c": jax.random.normal(ks[7], (1, 1), jnp.float32) * 0.01,
    }


def _reference(last_hidden, attention_mask, p):
    if attention_mask is None:
        pooled = last_hidden.mean(1)
    else:
        m = attention_mask.astype(jnp.float32)[:, :, None]
        pooled = (last_hidden * m).sum(1) / m.sum(1)
    hr = jnp.maximum(pooled @ p["w1r"] + p["b1r"], 0.0)
    reward = hr @ p["w2r"] + p["b2r"]
    hc = jnp.maximum(pooled @ p["w1c"] + p["b1c"], 0.0)
    conf = jax.nn.sigmoid(hc @ p["w2c"] + p["b2c"])
    return reward, conf


if __name__ == "__main__":
    key = jax.random.PRNGKey(0)
    k1, k2, k3, k4, kp, kp2 = jax.random.split(key, 6)

    # ---- Test 1: small shapes, single-tile path (B=2, S=8, H=32) ----------
    B, S, H = 2, 8, 32
    last_hidden = jax.random.normal(k1, (B, S, H), jnp.float32)
    lengths = jnp.array([8, 5], jnp.int32)
    attention_mask = (jnp.arange(S)[None, :] < lengths[:, None]).astype(jnp.float32)
    params = init_params(kp, H, head_dim=512)

    reward, conf = reward_model_forward(last_hidden, attention_mask, params)
    reward, conf = jax.block_until_ready((reward, conf))
    ref_r, ref_c = _reference(last_hidden, attention_mask, params)
    assert reward.shape == (B, 1) and conf.shape == (B, 1)
    assert jnp.allclose(reward, ref_r, atol=1e-4, rtol=1e-4)
    assert jnp.allclose(conf, ref_c, atol=1e-4, rtol=1e-4)

    # attention_mask=None path (plain mean over seq)
    r_none, c_none = reward_model_forward(last_hidden, None, params)
    jax.block_until_ready((r_none, c_none))
    ref_rn, ref_cn = _reference(last_hidden, None, params)
    assert jnp.allclose(r_none, ref_rn, atol=1e-4, rtol=1e-4)
    assert jnp.allclose(c_none, ref_cn, atol=1e-4, rtol=1e-4)

    # return_conf=False path
    r_only = reward_model_forward(last_hidden, attention_mask, params,
                                  return_conf=False)
    jax.block_until_ready(r_only)
    assert r_only.shape == (B, 1)
    assert jnp.allclose(r_only, ref_r, atol=1e-4, rtol=1e-4)

    # ---- Test 2: f32, ragged seq tail with NO padding of last_hidden ------
    B2, S2, H2 = 8, 20, 32
    last_hidden2 = jax.random.normal(k2, (B2, S2, H2), jnp.float32)
    lengths2 = jnp.array([20, 17, 13, 9, 20, 5, 1, 12], jnp.int32)
    attention_mask2 = (jnp.arange(S2)[None, :] < lengths2[:, None]).astype(jnp.float32)
    reward2, conf2 = reward_model_forward(last_hidden2, attention_mask2, params,
                                          seq_tile=8)   # grid (1,3), partial tail
    reward2, conf2 = jax.block_until_ready((reward2, conf2))
    ref_r2, ref_c2 = _reference(last_hidden2, attention_mask2, params)
    assert reward2.shape == (B2, 1) and conf2.shape == (B2, 1)
    assert jnp.allclose(reward2, ref_r2, atol=1e-4, rtol=1e-4)
    assert jnp.allclose(conf2, ref_c2, atol=1e-4, rtol=1e-4)

    # ---- Test 3: native bf16 streaming, 2 batch blocks, bf16 ragged tail --
    B3, S3, H3 = 16, 40, 128
    x3 = jax.random.normal(k3, (B3, S3, H3), jnp.float32).astype(jnp.bfloat16)
    lengths3 = jax.random.randint(k4, (B3,), 1, S3 + 1).astype(jnp.int32)
    attention_mask3 = (jnp.arange(S3)[None, :] < lengths3[:, None]).astype(jnp.float32)
    params3 = init_params(kp2, H3, head_dim=512)
    reward3, conf3 = reward_model_forward(x3, attention_mask3, params3,
                                          seq_tile=16)  # bf16 -> tS multiple of 16
    reward3, conf3 = jax.block_until_ready((reward3, conf3))
    ref_r3, ref_c3 = _reference(x3.astype(jnp.float32), attention_mask3, params3)
    assert jnp.allclose(reward3, ref_r3, atol=2e-3, rtol=2e-3)
    assert jnp.allclose(conf3, ref_c3, atol=2e-3, rtol=2e-3)

    print("KERNEL_OK")
</pallas_src>

<mosaic_0001>
module attributes {stable_mosaic.version = 11 : i64} {
  func.func @_pooled_heads_kernel(%arg0: i32, %arg1: i32, %arg2: memref<2x8x32xf32, #tpu.memory_space<vmem>>, %arg3: memref<2x8x1xf32, #tpu.memory_space<vmem>>, %arg4: memref<32x1024xf32, #tpu.memory_space<vmem>>, %arg5: memref<1x1024xf32, #tpu.memory_space<vmem>>, %arg6: memref<1024x2xf32, #tpu.memory_space<vmem>>, %arg7: memref<1x2xf32, #tpu.memory_space<vmem>>, %arg8: memref<2x2xf32, #tpu.memory_space<vmem>>, %arg9: memref<2x32xf32, #tpu.memory_space<vmem>>, %arg10: memref<2x1xf32, #tpu.memory_space<vmem>>) attributes {dimension_semantics = [#tpu.dimension_semantics<parallel>, #tpu.dimension_semantics<arbitrary>], iteration_bounds = array<i64: 1, 1>, scalar_prefetch = 0 : i64, scratch_operands = 2 : i64, tpu.core_type = #tpu.core_type<tc>, window_params = [{transform_indices = @transform_0, window_bounds = array<i64: 2, 8, 32>}, {transform_indices = @transform_1, window_bounds = array<i64: 2, 8, 1>}, {pipeline_mode = #tpu.pipeline_mode<synchronous>, transform_indices = @transform_2, window_bounds = array<i64: 32, 1024>}, {pipeline_mode = #tpu.pipeline_mode<synchronous>, transform_indices = @transform_3, window_bounds = array<i64: 1, 1024>}, {pipeline_mode = #tpu.pipeline_mode<synchronous>, transform_indices = @transform_4, window_bounds = array<i64: 1024, 2>}, {pipeline_mode = #tpu.pipeline_mode<synchronous>, transform_indices = @transform_5, window_bounds = array<i64: 1, 2>}, {transform_indices = @transform_6, window_bounds = array<i64: 2, 2>}]} {
    %c0_i32 = arith.constant 0 : i32
    %0 = arith.cmpi eq, %arg1, %c0_i32 : i32
    %1 = arith.extui %0 : i1 to i32
    %c0_i32_0 = arith.constant 0 : i32
    %2 = arith.cmpi ne, %1, %c0_i32_0 : i32
    scf.if %2 {
      %cst_19 = arith.constant 0.000000e+00 : f32
      %24 = vector.broadcast %cst_19 : f32 to vector<2x32xf32>
      %c0_20 = arith.constant 0 : index
      %c0_21 = arith.constant 0 : index
      %25 = vector.load %arg9[%c0_20, %c0_21] : memref<2x32xf32, #tpu.memory_space<vmem>>, vector<2x32xf32>
      tpu.vector_store %arg9[%c0_20, %c0_21], %24 {strides = array<i32>} : memref<2x32xf32, #tpu.memory_space<vmem>>, vector<2x32xf32>,
      %cst_22 = arith.constant 0.000000e+00 : f32
      %26 = vector.broadcast %cst_22 : f32 to vector<2x1xf32>
      %c0_23 = arith.constant 0 : index
      %c0_24 = arith.constant 0 : index
      %27 = vector.load %arg10[%c0_23, %c0_24] : memref<2x1xf32, #tpu.memory_space<vmem>>, vector<2x1xf32>
      tpu.vector_store %arg10[%c0_23, %c0_24], %26 {strides = array<i32>} : memref<2x1xf32, #tpu.memory_space<vmem>>, vector<2x1xf32>,
    } else {
    }
    %c0 = arith.constant 0 : index
    %c0_1 = arith.constant 0 : index
    %c0_2 = arith.constant 0 : index
    %3 = vector.load %arg2[%c0, %c0_1, %c0_2] : memref<2x8x32xf32, #tpu.memory_space<vmem>>, vector<2x8x32xf32>
    %c0_3 = arith.constant 0 : index
    %c0_4 = arith.constant 0 : index
    %c0_5 = arith.constant 0 : index
    %4 = vector.load %arg3[%c0_3, %c0_4, %c0_5] : memref<2x8x1xf32, #tpu.memory_space<vmem>>, vector<2x8x1xf32>
    %cst = arith.constant 0.000000e+00 : f32
    %5 = vector.broadcast %cst : f32 to vector<2x8x1xf32>
    %6 = arith.cmpf ogt, %4, %5 : vector<2x8x1xf32>
    %7 = vector.broadcast %4 : vector<2x8x1xf32> to vector<2x8x32xf32>
    %8 = arith.mulf %3, %7 : vector<2x8x32xf32>
    %cst_6 = arith.constant 0.000000e+00 : f32
    %9 = vector.shape_cast %6 : vector<2x8x1xi1> to vector<2x8x1xi1>
    %10 = vector.broadcast %9 : vector<2x8x1xi1> to vector<2x8x32xi1>
    %11 = vector.broadcast %cst_6 : f32 to vector<2x8x32xf32>
    %12 = arith.select %10, %8, %11 : vector<2x8x32xi1>, vector<2x8x32xf32>
    %c0_7 = arith.constant 0 : index
    %c0_8 = arith.constant 0 : index
    %13 = vector.load %arg9[%c0_7, %c0_8] : memref<2x32xf32, #tpu.memory_space<vmem>>, vector<2x32xf32>
    %cst_9 = arith.constant dense<0.000000e+00> : vector<2x32xf32>
    %14 = vector.multi_reduction <add>, %12, %cst_9 [1] : vector<2x8x32xf32> to vector<2x32xf32>
    %15 = arith.addf %13, %14 : vector<2x32xf32>
    %c0_10 = arith.constant 0 : index
    %c0_11 = arith.constant 0 : index
    %16 = vector.load %arg9[%c0_10, %c0_11] : memref<2x32xf32, #tpu.memory_space<vmem>>, vector<2x32xf32>
    tpu.vector_store %arg9[%c0_10, %c0_11], %15 {strides = array<i32>} : memref<2x32xf32, #tpu.memory_space<vmem>>, vector<2x32xf32>,
    %c0_12 = arith.constant 0 : index
    %c0_13 = arith.constant 0 : index
    %17 = vector.load %arg10[%c0_12, %c0_13] : memref<2x1xf32, #tpu.memory_space<vmem>>, vector<2x1xf32>
    %cst_14 = arith.constant dense<0.000000e+00> : vector<2x1xf32>
    %18 = vector.multi_reduction <add>, %4, %cst_14 [1] : vector<2x8x1xf32> to vector<2x1xf32>
    %19 = arith.addf %17, %18 : vector<2x1xf32>
    %c0_15 = arith.constant 0 : index
    %c0_16 = arith.constant 0 : index
    %20 = vector.load %arg10[%c0_15, %c0_16] : memref<2x1xf32, #tpu.memory_space<vmem>>, vector<2x1xf32>
    tpu.vector_store %arg10[%c0_15, %c0_16], %19 {strides = array<i32>} : memref<2x1xf32, #tpu.memory_space<vmem>>, vector<2x1xf32>,
    %c0_i32_17 = arith.constant 0 : i32
    %21 = arith.cmpi eq, %arg1, %c0_i32_17 : i32
    %22 = arith.extui %21 : i1 to i32
    %c0_i32_18 = arith.constant 0 : i32
    %23 = arith.cmpi ne, %22, %c0_i32_18 : i32
    scf.if %23 {
      %c0_19 = arith.constant 0 : index
      %c0_20 = arith.constant 0 : index
      %24 = vector.load %arg9[%c0_19, %c0_20] : memref<2x32xf32, #tpu.memory_space<vmem>>, vector<2x32xf32>
      %c0_21 = arith.constant 0 : index
      %c0_22 = arith.constant 0 : index
      %25 = vector.load %arg10[%c0_21, %c0_22] : memref<2x1xf32, #tpu.memory_space<vmem>>, vector<2x1xf32>
      %26 = vector.broadcast %25 : vector<2x1xf32> to vector<2x32xf32>
      %27 = arith.divf %24, %26 : vector<2x32xf32>
      %c0_23 = arith.constant 0 : index
      %c0_24 = arith.constant 0 : index
      %28 = vector.load %arg4[%c0_23, %c0_24] : memref<32x1024xf32, #tpu.memory_space<vmem>>, vector<32x1024xf32>
      %cst_25 = arith.constant dense<0.000000e+00> : vector<2x1024xf32>
      %29 = tpu.matmul %27, %28, %cst_25 {dimension_numbers = #tpu.dot_dimension_numbers<[1], [0], [0], [1], [0, 0, 1, 1], [], []>} : vector<2x32xf32>, vector<32x1024xf32>, vector<2x1024xf32> -> vector<2x1024xf32>
      %c0_26 = arith.constant 0 : index
      %c0_27 = arith.constant 0 : index
      %30 = vector.load %arg5[%c0_26, %c0_27] : memref<1x1024xf32, #tpu.memory_space<vmem>>, vector<1x1024xf32>
      %31 = vector.broadcast %30 : vector<1x1024xf32> to vector<2x1024xf32>
      %32 = arith.addf %29, %31 : vector<2x1024xf32>
      %cst_28 = arith.constant 0.000000e+00 : f32
      %33 = vector.broadcast %cst_28 : f32 to vector<2x1024xf32>
      %34 = arith.maximumf %32, %33 : vector<2x1024xf32>
      %c0_29 = arith.constant 0 : index
      %c0_30 = arith.constant 0 : index
      %35 = vector.load %arg6[%c0_29, %c0_30] : memref<1024x2xf32, #tpu.memory_space<vmem>>, vector<1024x2xf32>
      %cst_31 = arith.constant dense<0.000000e+00> : vector<2x2xf32>
      %36 = tpu.matmul %34, %35, %cst_31 {dimension_numbers = #tpu.dot_dimension_numbers<[1], [0], [0], [1], [0, 0, 1, 1], [], []>} : vector<2x1024xf32>, vector<1024x2xf32>, vector<2x2xf32> -> vector<2x2xf32>
      %c0_32 = arith.constant 0 : index
      %c0_33 = arith.constant 0 : index
      %37 = vector.load %arg7[%c0_32, %c0_33] : memref<1x2xf32, #tpu.memory_space<vmem>>, vector<1x2xf32>
      %38 = vector.broadcast %37 : vector<1x2xf32> to vector<2x2xf32>
      %39 = arith.addf %36, %38 : vector<2x2xf32>
      %40 = tpu.iota {dimensions = array<i32: 1>} : vector<2x2xi32>
      %c0_i32_34 = arith.constant 0 : i32
      %41 = vector.broadcast %c0_i32_34 : i32 to vector<2x2xi32>
      %42 = arith.cmpi eq, %40, %41 : vector<2x2xi32>
      %43 = arith.negf %39 : vector<2x2xf32>
      %44 = math.exp %43 : vector<2x2xf32>
      %cst_35 = arith.constant 1.000000e+00 : f32
      %45 = vector.broadcast %cst_35 : f32 to vector<2x2xf32>
      %46 = arith.addf %45, %44 : vector<2x2xf32>
      %47 = arith.divf %45, %46 : vector<2x2xf32>
      %48 = arith.select %42, %39, %47 : vector<2x2xi1>, vector<2x2xf32>
      %c0_36 = arith.constant 0 : index
      %c0_37 = arith.constant 0 : index
      %49 = vector.load %arg8[%c0_36, %c0_37] : memref<2x2xf32, #tpu.memory_space<vmem>>, vector<2x2xf32>
      tpu.vector_store %arg8[%c0_36, %c0_37], %48 {strides = array<i32>} : memref<2x2xf32, #tpu.memory_space<vmem>>, vector<2x2xf32>,
    } else {
    }
    return
  }
  func.func @transform_0(%arg0: i32, %arg1: i32) -> (i32, i32, i32) {
    %c0_i32 = arith.constant 0 : i32
    %c0_i32_0 = arith.constant 0 : i32
    return %arg0, %arg1, %c0_i32 : i32, i32, i32
  }
  func.func @transform_1(%arg0: i32, %arg1: i32) -> (i32, i32, i32) {
    %c0_i32 = arith.constant 0 : i32
    %c0_i32_0 = arith.constant 0 : i32
    return %arg0, %arg1, %c0_i32 : i32, i32, i32
  }
  func.func @transform_2(%arg0: i32, %arg1: i32) -> (i32, i32) {
    %c0_i32 = arith.constant 0 : i32
    %c0_i32_0 = arith.constant 0 : i32
    %c0_i32_1 = arith.constant 0 : i32
    return %c0_i32, %c0_i32_0 : i32, i32
  }
  func.func @transform_3(%arg0: i32, %arg1: i32) -> (i32, i32) {
    %c0_i32 = arith.constant 0 : i32
    %c0_i32_0 = arith.constant 0 : i32
    %c0_i32_1 = arith.constant 0 : i32
    return %c0_i32, %c0_i32_0 : i32, i32
  }
  func.func @transform_4(%arg0: i32, %arg1: i32) -> (i32, i32) {
    %c0_i32 = arith.constant 0 : i32
    %c0_i32_0 = arith.constant 0 : i32
    %c0_i32_1 = arith.constant 0 : i32
    return %c0_i32, %c0_i32_0 : i32, i32
  }
  func.func @transform_5(%arg0: i32, %arg1: i32) -> (i32, i32) {
    %c0_i32 = arith.constant 0 : i32
    %c0_i32_0 = arith.constant 0 : i32
    %c0_i32_1 = arith.constant 0 : i32
    return %c0_i32, %c0_i32_0 : i32, i32
  }
  func.func @transform_6(%arg0: i32, %arg1: i32) -> (i32, i32) {
    %c0_i32 = arith.constant 0 : i32
    %c0_i32_0 = arith.constant 0 : i32
    return %arg0, %c0_i32 : i32, i32
  }
}

module attributes {stable_mosaic.version = 11 : i64} {
  func.func @_pooled_heads_kernel(%arg0: i32, %arg1: i32, %arg2: memref<2x8x32xf32, #tpu.memory_space<vmem>>, %arg3: memref<2x8x1xf32, #tpu.memory_space<vmem>>, %arg4: memref<32x1024xf32, #tpu.memory_space<vmem>>, %arg5: memref<1x1024xf32, #tpu.memory_space<vmem>>, %arg6: memref<1024x2xf32, #tpu.memory_space<vmem>>, %arg7: memref<1x2xf32, #tpu.memory_space<vmem>>, %arg8: memref<2x2xf32, #tpu.memory_space<vmem>>, %arg9: memref<2x32xf32, #tpu.memory_space<vmem>>, %arg10: memref<2x1xf32, #tpu.memory_space<vmem>>) attributes {dimension_semantics = [#tpu.dimension_semantics<parallel>, #tpu.dimension_semantics<arbitrary>], iteration_bounds = array<i64: 1, 1>, scalar_prefetch = 0 : i64, scratch_operands = 2 : i64, tpu.core_type = #tpu.core_type<tc>, window_params = [{transform_indices = @transform_0, window_bounds = array<i64: 2, 8, 32>}, {transform_indices = @transform_1, window_bounds = array<i64: 2, 8, 1>}, {pipeline_mode = #tpu.pipeline_mode<synchronous>, transform_indices = @transform_2, window_bounds = array<i64: 32, 1024>}, {pipeline_mode = #tpu.pipeline_mode<synchronous>, transform_indices = @transform_3, window_bounds = array<i64: 1, 1024>}, {pipeline_mode = #tpu.pipeline_mode<synchronous>, transform_indices = @transform_4, window_bounds = array<i64: 1024, 2>}, {pipeline_mode = #tpu.pipeline_mode<synchronous>, transform_indices = @transform_5, window_bounds = array<i64: 1, 2>}, {transform_indices = @transform_6, window_bounds = array<i64: 2, 2>}]} {
    %c0_i32 = arith.constant 0 : i32
    %0 = arith.cmpi eq, %arg1, %c0_i32 : i32
    %1 = arith.extui %0 : i1 to i32
    %c0_i32_0 = arith.constant 0 : i32
    %2 = arith.cmpi ne, %1, %c0_i32_0 : i32
    scf.if %2 {
      %cst_19 = arith.constant 0.000000e+00 : f32
      %24 = vector.broadcast %cst_19 : f32 to vector<2x32xf32>
      %c0_20 = arith.constant 0 : index
      %c0_21 = arith.constant 0 : index
      %25 = vector.load %arg9[%c0_20, %c0_21] : memref<2x32xf32, #tpu.memory_space<vmem>>, vector<2x32xf32>
      tpu.vector_store %arg9[%c0_20, %c0_21], %24 {strides = array<i32>} : memref<2x32xf32, #tpu.memory_space<vmem>>, vector<2x32xf32>,
      %cst_22 = arith.constant 0.000000e+00 : f32
      %26 = vector.broadcast %cst_22 : f32 to vector<2x1xf32>
      %c0_23 = arith.constant 0 : index
      %c0_24 = arith.constant 0 : index
      %27 = vector.load %arg10[%c0_23, %c0_24] : memref<2x1xf32, #tpu.memory_space<vmem>>, vector<2x1xf32>
      tpu.vector_store %arg10[%c0_23, %c0_24], %26 {strides = array<i32>} : memref<2x1xf32, #tpu.memory_space<vmem>>, vector<2x1xf32>,
    } else {
    }
    %c0 = arith.constant 0 : index
    %c0_1 = arith.constant 0 : index
    %c0_2 = arith.constant 0 : index
    %3 = vector.load %arg2[%c0, %c0_1, %c0_2] : memref<2x8x32xf32, #tpu.memory_space<vmem>>, vector<2x8x32xf32>
    %c0_3 = arith.constant 0 : index
    %c0_4 = arith.constant 0 : index
    %c0_5 = arith.constant 0 : index
    %4 = vector.load %arg3[%c0_3, %c0_4, %c0_5] : memref<2x8x1xf32, #tpu.memory_space<vmem>>, vector<2x8x1xf32>
    %cst = arith.constant 0.000000e+00 : f32
    %5 = vector.broadcast %cst : f32 to vector<2x8x1xf32>
    %6 = arith.cmpf ogt, %4, %5 : vector<2x8x1xf32>
    %7 = vector.broadcast %4 : vector<2x8x1xf32> to vector<2x8x32xf32>
    %8 = arith.mulf %3, %7 : vector<2x8x32xf32>
    %cst_6 = arith.constant 0.000000e+00 : f32
    %9 = vector.shape_cast %6 : vector<2x8x1xi1> to vector<2x8x1xi1>
    %10 = vector.broadcast %9 : vector<2x8x1xi1> to vector<2x8x32xi1>
    %11 = vector.broadcast %cst_6 : f32 to vector<2x8x32xf32>
    %12 = arith.select %10, %8, %11 : vector<2x8x32xi1>, vector<2x8x32xf32>
    %c0_7 = arith.constant 0 : index
    %c0_8 = arith.constant 0 : index
    %13 = vector.load %arg9[%c0_7, %c0_8] : memref<2x32xf32, #tpu.memory_space<vmem>>, vector<2x32xf32>
    %cst_9 = arith.constant dense<0.000000e+00> : vector<2x32xf32>
    %14 = vector.multi_reduction <add>, %12, %cst_9 [1] : vector<2x8x32xf32> to vector<2x32xf32>
    %15 = arith.addf %13, %14 : vector<2x32xf32>
    %c0_10 = arith.constant 0 : index
    %c0_11 = arith.constant 0 : index
    %16 = vector.load %arg9[%c0_10, %c0_11] : memref<2x32xf32, #tpu.memory_space<vmem>>, vector<2x32xf32>
    tpu.vector_store %arg9[%c0_10, %c0_11], %15 {strides = array<i32>} : memref<2x32xf32, #tpu.memory_space<vmem>>, vector<2x32xf32>,
    %c0_12 = arith.constant 0 : index
    %c0_13 = arith.constant 0 : index
    %17 = vector.load %arg10[%c0_12, %c0_13] : memref<2x1xf32, #tpu.memory_space<vmem>>, vector<2x1xf32>
    %cst_14 = arith.constant dense<0.000000e+00> : vector<2x1xf32>
    %18 = vector.multi_reduction <add>, %4, %cst_14 [1] : vector<2x8x1xf32> to vector<2x1xf32>
    %19 = arith.addf %17, %18 : vector<2x1xf32>
    %c0_15 = arith.constant 0 : index
    %c0_16 = arith.constant 0 : index
    %20 = vector.load %arg10[%c0_15, %c0_16] : memref<2x1xf32, #tpu.memory_space<vmem>>, vector<2x1xf32>
    tpu.vector_store %arg10[%c0_15, %c0_16], %19 {strides = array<i32>} : memref<2x1xf32, #tpu.memory_space<vmem>>, vector<2x1xf32>,
    %c0_i32_17 = arith.constant 0 : i32
    %21 = arith.cmpi eq, %arg1, %c0_i32_17 : i32
    %22 = arith.extui %21 : i1 to i32
    %c0_i32_18 = arith.constant 0 : i32
    %23 = arith.cmpi ne, %22, %c0_i32_18 : i32
    scf.if %23 {
      %c0_19 = arith.constant 0 : index
      %c0_20 = arith.constant 0 : index
      %24 = vector.load %arg9[%c0_19, %c0_20] : memref<2x32xf32, #tpu.memory_space<vmem>>, vector<2x32xf32>
      %c0_21 = arith.constant 0 : index
      %c0_22 = arith.constant 0 : index
      %25 = vector.load %arg10[%c0_21, %c0_22] : memref<2x1xf32, #tpu.memory_space<vmem>>, vector<2x1xf32>
      %26 = vector.broadcast %25 : vector<2x1xf32> to vector<2x32xf32>
      %27 = arith.divf %24, %26 : vector<2x32xf32>
      %c0_23 = arith.constant 0 : index
      %c0_24 = arith.constant 0 : index
      %28 = vector.load %arg4[%c0_23, %c0_24] : memref<32x1024xf32, #tpu.memory_space<vmem>>, vector<32x1024xf32>
      %cst_25 = arith.constant dense<0.000000e+00> : vector<2x1024xf32>
      %29 = tpu.matmul %27, %28, %cst_25 {dimension_numbers = #tpu.dot_dimension_numbers<[1], [0], [0], [1], [0, 0, 1, 1], [], []>} : vector<2x32xf32>, vector<32x1024xf32>, vector<2x1024xf32> -> vector<2x1024xf32>
      %c0_26 = arith.constant 0 : index
      %c0_27 = arith.constant 0 : index
      %30 = vector.load %arg5[%c0_26, %c0_27] : memref<1x1024xf32, #tpu.memory_space<vmem>>, vector<1x1024xf32>
      %31 = vector.broadcast %30 : vector<1x1024xf32> to vector<2x1024xf32>
      %32 = arith.addf %29, %31 : vector<2x1024xf32>
      %cst_28 = arith.constant 0.000000e+00 : f32
      %33 = vector.broadcast %cst_28 : f32 to vector<2x1024xf32>
      %34 = arith.maximumf %32, %33 : vector<2x1024xf32>
      %c0_29 = arith.constant 0 : index
      %c0_30 = arith.constant 0 : index
      %35 = vector.load %arg6[%c0_29, %c0_30] : memref<1024x2xf32, #tpu.memory_space<vmem>>, vector<1024x2xf32>
      %cst_31 = arith.constant dense<0.000000e+00> : vector<2x2xf32>
      %36 = tpu.matmul %34, %35, %cst_31 {dimension_numbers = #tpu.dot_dimension_numbers<[1], [0], [0], [1], [0, 0, 1, 1], [], []>} : vector<2x1024xf32>, vector<1024x2xf32>, vector<2x2xf32> -> vector<2x2xf32>
      %c0_32 = arith.constant 0 : index
      %c0_33 = arith.constant 0 : index
      %37 = vector.load %arg7[%c0_32, %c0_33] : memref<1x2xf32, #tpu.memory_space<vmem>>, vector<1x2xf32>
      %38 = vector.broadcast %37 : vector<1x2xf32> to vector<2x2xf32>
      %39 = arith.addf %36, %38 : vector<2x2xf32>
      %40 = tpu.iota {dimensions = array<i32: 1>} : vector<2x2xi32>
      %c0_i32_34 = arith.constant 0 : i32
      %41 = vector.broadcast %c0_i32_34 : i32 to vector<2x2xi32>
      %42 = arith.cmpi eq, %40, %41 : vector<2x2xi32>
      %43 = arith.negf %39 : vector<2x2xf32>
      %44 = math.exp %43 : vector<2x2xf32>
      %cst_35 = arith.constant 1.000000e+00 : f32
      %45 = vector.broadcast %cst_35 : f32 to vector<2x2xf32>
      %46 = arith.addf %45, %44 : vector<2x2xf32>
      %47 = arith.divf %45, %46 : vector<2x2xf32>
      %48 = arith.select %42, %39, %47 : vector<2x2xi1>, vector<2x2xf32>
      %c0_36 = arith.constant 0 : index
      %c0_37 = arith.constant 0 : index
      %49 = vector.load %arg8[%c0_36, %c0_37] : memref<2x2xf32, #tpu.memory_space<vmem>>, vector<2x2xf32>
      tpu.vector_store %arg8[%c0_36, %c0_37], %48 {strides = array<i32>} : memref<2x2xf32, #tpu.memory_space<vmem>>, vector<2x2xf32>,
    } else {
    }
    return
  }
  func.func @transform_0(%arg0: i32, %arg1: i32) -> (i32, i32, i32) {
    %c0_i32 = arith.constant 0 : i32
    %c0_i32_0 = arith.constant 0 : i32
    return %arg0, %arg1, %c0_i32 : i32, i32, i32
  }
  func.func @transform_1(%arg0: i32, %arg1: i32) -> (i32, i32, i32) {
    %c0_i32 = arith.constant 0 : i32
    %c0_i32_0 = arith.constant 0 : i32
    return %arg0, %arg1, %c0_i32 : i32, i32, i32
  }
  func.func @transform_2(%arg0: i32, %arg1: i32) -> (i32, i32) {
    %c0_i32 = arith.constant 0 : i32
    %c0_i32_0 = arith.constant 0 : i32
    %c0_i32_1 = arith.constant 0 : i32
    return %c0_i32, %c0_i32_0 : i32, i32
  }
  func.func @transform_3(%arg0: i32, %arg1: i32) -> (i32, i32) {
    %c0_i32 = arith.constant 0 : i32
    %c0_i32_0 = arith.constant 0 : i32
    %c0_i32_1 = arith.constant 0 : i32
    return %c0_i32, %c0_i32_0 : i32, i32
  }
  func.func @transform_4(%arg0: i32, %arg1: i32) -> (i32, i32) {
    %c0_i32 = arith.constant 0 : i32
    %c0_i32_0 = arith.constant 0 : i32
    %c0_i32_1 = arith.constant 0 : i32
    return %c0_i32, %c0_i32_0 : i32, i32
  }
  func.func @transform_5(%arg0: i32, %arg1: i32) -> (i32, i32) {
    %c0_i32 = arith.constant 0 : i32
    %c0_i32_0 = arith.constant 0 : i32
    %c0_i32_1 = arith.constant 0 : i32
    return %c0_i32, %c0_i32_0 : i32, i32
  }
  func.func @transform_6(%arg0: i32, %arg1: i32) -> (i32, i32) {
    %c0_i32 = arith.constant 0 : i32
    %c0_i32_0 = arith.constant 0 : i32
    return %arg0, %c0_i32 : i32, i32
  }
}

</mosaic_0001>

<llo_original>
// kernel: tpu_custom_call.1
$region0: #{tpu_custom_call.1}
  #allocation0 [shape = 'u32[]', space=smem, size = 0x4, offset = 0x4, fixed_abs, tag = 'smem constant byte address 0x4 - core index']
  #allocation1 [shape = 'u32[72,128]{1,0:T(1,128)}', space=vmem, size = 0x9000, scoped, tag = 'internal scratch']
  #allocation2 [shape = 'f32[2,32]{1,0:T(2,128)}', space=vmem, size = 0x400, scoped, tag = 'scratch operand']
  #allocation3 [shape = 'f32[2,1]{1,0:T(2,128)}', space=vmem, size = 0x400, scoped, tag = 'scratch operand']
  %s0 = inlined_call_operand.vmem [shape: f32[2,8,32], index: 0, kind: input, shape index: {}]
  %s1 = inlined_call_operand.vmem [shape: f32[2,8,1], index: 1, kind: input, shape index: {}]
  %s2 = inlined_call_operand.vmem [shape: f32[32,1024], index: 2, kind: input, shape index: {}]
  %s3 = inlined_call_operand.vmem [shape: f32[1,1024], index: 3, kind: input, shape index: {}]
  %s4 = inlined_call_operand.vmem [shape: f32[1024,2], index: 4, kind: input, shape index: {}]
  %s5 = inlined_call_operand.vmem [shape: f32[1,2], index: 5, kind: input, shape index: {}]
  %s6 = inlined_call_operand.hbm [shape: f32[2,2], index: 6, kind: output, shape index: {}]
  %s7 = sld [smem:[#allocation0]]
  $region42: #{tpu_custom_call.1} parent=0
    _
  %s9 = ssub.s32 1, %s7
  %s10 = scalar_select 0, %s9, %s7
  $region1: #{tpu_custom_call.1} parent=0
    #allocation4 [shape = 'u8[1024]{0}', space=vmem, size = 0x400, scoped, tag = 'output window, operand 0, single buffered']
    #allocation5 [shape = 's32[1]{0}', space=sflag, size = 0x4, scoped, tag = 'scoped memory for tpu_custom_call.1']
    %11 = vsyncpa [#allocation5], 0
    // Predicated region
    $region2: #{tpu_custom_call.1} parent=1 // pred_check
      _
    $region3: #{tpu_custom_call.1} parent=1 // pred_check_branch
      %13 = sbr.rel (0) target = $region5
    $region4: #{tpu_custom_call.1} parent=1 // pred_region
      _
    $region5: #{tpu_custom_call.1} parent=1 // pred_fallthru
      _
    // Predicated region
    $region6: #{tpu_custom_call.1} parent=1 // pred_check
      _
    $region7: #{tpu_custom_call.1} parent=1 // pred_check_branch
      %15 = sbr.rel (0) target = $region9
    $region8: #{tpu_custom_call.1} parent=1 // pred_region
      _
    $region9: #{tpu_custom_call.1} parent=1 // pred_fallthru
      _
    // Predicated region
    $region10: #{tpu_custom_call.1} parent=1 // pred_check
      _
    $region11: #{tpu_custom_call.1} parent=1 // pred_check_branch
      %17 = sbr.rel (0) target = $region13
    $region12: #{tpu_custom_call.1} parent=1 // pred_region
      _
    $region13: #{tpu_custom_call.1} parent=1 // pred_fallthru
      _
    // Predicated region
    $region14: #{tpu_custom_call.1} parent=1 // pred_check
      _
    $region15: #{tpu_custom_call.1} parent=1 // pred_check_branch
      %19 = sbr.rel (0) target = $region17
    $region16: #{tpu_custom_call.1} parent=1 // pred_region
      _
    $region17: #{tpu_custom_call.1} parent=1 // pred_fallthru
      _
    // Predicated region
    $region18: #{tpu_custom_call.1} parent=1 // pred_check
      _
    $region19: #{tpu_custom_call.1} parent=1 // pred_check_branch
      %21 = sbr.rel (0) target = $region21
    $region20: #{tpu_custom_call.1} parent=1 // pred_region
      _
    $region21: #{tpu_custom_call.1} parent=1 // pred_fallthru
      _
    // Predicated region
    $region22: #{tpu_custom_call.1} parent=1 // pred_check
      _
    $region23: #{tpu_custom_call.1} parent=1 // pred_check_branch
      %23 = sbr.rel (0) target = $region25
    $region24: #{tpu_custom_call.1} parent=1 // pred_region
      _
    $region25: #{tpu_custom_call.1} parent=1 // pred_fallthru
      _
    %p24 = scmp.eq.s32.totalorder 0, 0
    // Predicated region
    $region26: #{tpu_custom_call.1} parent=1 // pred_check
      %p25 = pneg %p24
    $region27: #{tpu_custom_call.1} parent=1 // pred_check_branch
      %27 = sbr.rel (%p25) target = $region29
    $region28: #{tpu_custom_call.1} parent=1 // pred_region
      %vm28 = vcmask 254976
      %29 = vst.msk [vmem:[#allocation2] sm:$0x3] %vm28, 0.0
      %vm30 = vcmask 1024
      %31 = vst.msk [vmem:[#allocation3] sm:$0x3] %vm30, 0.0
    $region29: #{tpu_custom_call.1} parent=1 // pred_fallthru
      _
    %v32 = vld [vmem:[%s0] sm:$0xff]
    %v33 = vld [vmem:[%s0 + $0x8] sm:$0xff]
    %v34 = vld [vmem:[%s1] sm:$0xff]
    %v35 = vld [vmem:[%s1 + $0x8] sm:$0xff]
    %vm36 = vcmp.gt.f32.partialorder %v34, 0.0
    %vm37 = vcmp.gt.f32.partialorder %v35, 0.0
    %39 = vset.pattern.permute.xlu0 0
    %40 = vperm.xlu0 %39, %v34
    %v41 = vpop.permute.xlu0 %40
    %44 = vset.pattern.permute.xlu0 0
    %45 = vperm.xlu0 %44, %v35
    %v46 = vpop.permute.xlu0 %45
    %v48 = vmul.f32 %v32, %v41
    %v49 = vmul.f32 %v33, %v46
    %v50 = vsel %vm36, 1, 0
    %v51 = vsel %vm37, 1, 0
    %52 = vset.pattern.permute.xlu0 0
    %53 = vperm.xlu0 %52, %v50
    %v54 = vpop.permute.xlu0 %53
    %55 = vset.pattern.permute.xlu0 0
    %56 = vperm.xlu0 %55, %v51
    %v57 = vpop.permute.xlu0 %56
    %vm58 = vcmp.eq.s32.totalorder %v54, 1
    %vm59 = vcmp.eq.s32.totalorder %v57, 1
    %v60 = vsel %vm58, %v48, 0.0
    %v61 = vsel %vm59, %v49, 0.0
    %v62 = vld [vmem:[#allocation2] sm:$0x3]
    %vm63 = vcmask 261120
    %v64 = vsel %vm63, %v60, 0.0
    %v65 = vrot.slane %v64, 4
    %v66 = vadd.f32 %v64, %v65
    %v67 = vrot.slane %v66, 2
    %v68 = vadd.f32 %v66, %v67
    %v69 = vrot.slane %v68, 1
    %v70 = vadd.f32 %v68, %v69
    %v71 = vsel %vm63, %v61, 0.0
    %v72 = vrot.slane %v71, 4
    %v73 = vadd.f32 %v71, %v72
    %v74 = vrot.slane %v73, 2
    %v75 = vadd.f32 %v73, %v74
    %v76 = vrot.slane %v75, 1
    %v77 = vadd.f32 %v75, %v76
    %vm80 = vcmask 1041409
    %v81 = vsel %vm80, %v77, %v70
    %v83 = vadd.f32 %v62, %v81
    %vm84 = vcmask 254976
    %85 = vst.msk [vmem:[#allocation2] sm:$0x3] %vm84, %v83
    %v86 = vld [vmem:[#allocation3] sm:$0x3]
    %vm87 = vcmask 7168
    %v88 = vsel %vm87, %v34, 0.0
    %v89 = vrot.slane %v88, 4
    %v90 = vadd.f32 %v88, %v89
    %v91 = vrot.slane %v90, 2
    %v92 = vadd.f32 %v90, %v91
    %v93 = vrot.slane %v92, 1
    %v94 = vadd.f32 %v92, %v93
    %v95 = vsel %vm87, %v35, 0.0
    %v96 = vrot.slane %v95, 4
    %v97 = vadd.f32 %v95, %v96
    %v98 = vrot.slane %v97, 2
    %v99 = vadd.f32 %v97, %v98
    %v100 = vrot.slane %v99, 1
    %v101 = vadd.f32 %v99, %v100
    %v104 = vsel %vm80, %v101, %v94
    %v106 = vadd.f32 %v86, %v104
    %vm107 = vcmask 1024
    %108 = vst.msk [vmem:[#allocation3] sm:$0x3] %vm107, %v106
    // Predicated region
    $region30: #{tpu_custom_call.1} parent=1 // pred_check
      %p109 = pneg %p24
    $region31: #{tpu_custom_call.1} parent=1 // pred_check_branch
      %111 = sbr.rel (%p109) target = $region33
    $region32: #{tpu_custom_call.1} parent=1 // pred_region
      %v112 = vld [vmem:[#allocation2] sm:$0x3]
      %v113 = vld [vmem:[#allocation3] sm:$0x3]
      %115 = vset.pattern.permute.xlu0 0
      %116 = vperm.xlu0 %115, %v113
      %v117 = vpop.permute.xlu0 %116
      %v119 = vrcp.pop %v117
      %v120 = vmul.f32 %v117, %v119
      %v121 = vsub.f32 1.0, %v120
      %v122 = vmul.f32 %v119, %v121
      %v123 = vadd.f32 %v119, %v122
      %vm124 = vweird.f32 %v117
      %vm125 = vweird.f32 %v119
      %vm126 = vmor %vm124, %vm125
      %v127 = vsel %vm126, %v119, %v123
      %v128 = vand.u32 2147483647, %v117
      %vm129 = vcmp.eq.f32.partialorder %v128, 8.507059e+37
      %v130 = vand.u32 %v117, 2147483648
      %v131 = vor.u32 1.1754944e-38, %v130
      %v132 = vsel %vm129, %v131, %v127
      %v133 = vmul.f32 %v112, %v132
      %v134 = vld [vmem:[%s2] sm:$0xff]
      %v135 = vld [vmem:[%s2 + $0x8] sm:$0xff]
      %v136 = vld [vmem:[%s2 + $0x10] sm:$0xff]
      %v137 = vld [vmem:[%s2 + $0x18] sm:$0xff]
      %v138 = vld [vmem:[%s2 + $0x20] sm:$0xff]
      %v139 = vld [vmem:[%s2 + $0x28] sm:$0xff]
      %v140 = vld [vmem:[%s2 + $0x30] sm:$0xff]
      %v141 = vld [vmem:[%s2 + $0x38] sm:$0xff]
      %v142 = vld [vmem:[%s2 + $0x40] sm:$0xff]
      %v143 = vld [vmem:[%s2 + $0x48] sm:$0xff]
      %v144 = vld [vmem:[%s2 + $0x50] sm:$0xff]
      %v145 = vld [vmem:[%s2 + $0x58] sm:$0xff]
      %v146 = vld [vmem:[%s2 + $0x60] sm:$0xff]
      %v147 = vld [vmem:[%s2 + $0x68] sm:$0xff]
      %v148 = vld [vmem:[%s2 + $0x70] sm:$0xff]
      %v149 = vld [vmem:[%s2 + $0x78] sm:$0xff]
      %v150 = vld [vmem:[%s2 + $0x80] sm:$0xff]
      %v151 = vld [vmem:[%s2 + $0x88] sm:$0xff]
      %v152 = vld [vmem:[%s2 + $0x90] sm:$0xff]
      %v153 = vld [vmem:[%s2 + $0x98] sm:$0xff]
      %v154 = vld [vmem:[%s2 + $0xa0] sm:$0xff]
      %v155 = vld [vmem:[%s2 + $0xa8] sm:$0xff]
      %v156 = vld [vmem:[%s2 + $0xb0] sm:$0xff]
      %v157 = vld [vmem:[%s2 + $0xb8] sm:$0xff]
      %v158 = vld [vmem:[%s2 + $0xc0] sm:$0xff]
      %v159 = vld [vmem:[%s2 + $0xc8] sm:$0xff]
      %v160 = vld [vmem:[%s2 + $0xd0] sm:$0xff]
      %v161 = vld [vmem:[%s2 + $0xd8] sm:$0xff]
      %v162 = vld [vmem:[%s2 + $0xe0] sm:$0xff]
      %v163 = vld [vmem:[%s2 + $0xe8] sm:$0xff]
      %v164 = vld [vmem:[%s2 + $0xf0] sm:$0xff]
      %v165 = vld [vmem:[%s2 + $0xf8] sm:$0xff]
      %v166 = vld [vmem:[%s3] sm:$0xff]
      %v168 = vperm.slane %v166, 0
      %v169 = vperm.slane %v166, 1
      %v170 = vperm.slane %v166, 2
      %v171 = vperm.slane %v166, 3
      %v172 = vperm.slane %v166, 4
      %v173 = vperm.slane %v166, 5
      %v174 = vperm.slane %v166, 6
      %v175 = vperm.slane %v166, 7
      %v185 = vsel %vm63, %v133, 0
      %187 = vmatpush.msra.mxu0 0.0
      %188 = vmatpush.msra.mxu0 0.0
      %189 = vmatpush.msra.mxu0 0.0
      %190 = vmatpush.msra.mxu0 0.0
      %191 = vmatpush.msra.mxu0 0.0
      %192 = vmatpush.msra.mxu0 0.0
      %193 = vmatpush.msra.mxu0 0.0
      %194 = vmatpush.msra.mxu0 0.0
      %195 = vmatpush.msra.mxu0 0.0
      %196 = vmatpush.msra.mxu0 0.0
      %197 = vmatpush.msra.mxu0 0.0
      %198 = vmatpush.msra.mxu0 0.0
      %199 = vmatpush.msra.mxu0 %v158
      %200 = vmatpush.msra.mxu0 %v150
      %201 = vmatpush.msra.mxu0 %v142
      %202 = vmatpush.msra.mxu0 %v134
      %203 = vmatmul.f32.gmra.mxu0 %v185
      %v204 = vpop.f32.mrf.mxu0
      %v205 = vadd.f32 %v168, %v204
      %206 = vdwg.mxu0
      %207 = vmatpush.msra.mxu0 0.0
      %208 = vmatpush.msra.mxu0 0.0
      %209 = vmatpush.msra.mxu0 0.0
      %210 = vmatpush.msra.mxu0 0.0
      %211 = vmatpush.msra.mxu0 0.0
      %212 = vmatpush.msra.mxu0 0.0
      %213 = vmatpush.msra.mxu0 0.0
      %214 = vmatpush.msra.mxu0 0.0
      %215 = vmatpush.msra.mxu0 0.0
      %216 = vmatpush.msra.mxu0 0.0
      %217 = vmatpush.msra.mxu0 0.0
      %218 = vmatpush.msra.mxu0 0.0
      %219 = vmatpush.msra.mxu0 %v159
      %220 = vmatpush.msra.mxu0 %v151
      %221 = vmatpush.msra.mxu0 %v143
      %222 = vmatpush.msra.mxu0 %v135
      %223 = vmatmul.f32.gmra.mxu0 %v185
      %v224 = vpop.f32.mrf.mxu0
      %v225 = vadd.f32 %v169, %v224
      %226 = vdwg.mxu0
      %227 = vmatpush.msra.mxu0 0.0
      %228 = vmatpush.msra.mxu0 0.0
      %229 = vmatpush.msra.mxu0 0.0
      %230 = vmatpush.msra.mxu0 0.0
      %231 = vmatpush.msra.mxu0 0.0
      %232 = vmatpush.msra.mxu0 0.0
      %233 = vmatpush.msra.mxu0 0.0
      %234 = vmatpush.msra.mxu0 0.0
      %235 = vmatpush.msra.mxu0 0.0
      %236 = vmatpush.msra.mxu0 0.0
      %237 = vmatpush.msra.mxu0 0.0
      %238 = vmatpush.msra.mxu0 0.0
      %239 = vmatpush.msra.mxu0 %v160
      %240 = vmatpush.msra.mxu0 %v152
      %241 = vmatpush.msra.mxu0 %v144
      %242 = vmatpush.msra.mxu0 %v136
      %243 = vmatmul.f32.gmra.mxu0 %v185
      %v244 = vpop.f32.mrf.mxu0
      %v245 = vadd.f32 %v170, %v244
      %246 = vdwg.mxu0
      %247 = vmatpush.msra.mxu0 0.0
      %248 = vmatpush.msra.mxu0 0.0
      %249 = vmatpush.msra.mxu0 0.0
      %250 = vmatpush.msra.mxu0 0.0
      %251 = vmatpush.msra.mxu0 0.0
      %252 = vmatpush.msra.mxu0 0.0
      %253 = vmatpush.msra.mxu0 0.0
      %254 = vmatpush.msra.mxu0 0.0
      %255 = vmatpush.msra.mxu0 0.0
      %256 = vmatpush.msra.mxu0 0.0
      %257 = vmatpush.msra.mxu0 0.0
      %258 = vmatpush.msra.mxu0 0.0
      %259 = vmatpush.msra.mxu0 %v161
      %260 = vmatpush.msra.mxu0 %v153
      %261 = vmatpush.msra.mxu0 %v145
      %262 = vmatpush.msra.mxu0 %v137
      %263 = vmatmul.f32.gmra.mxu0 %v185
      %v264 = vpop.f32.mrf.mxu0
      %v265 = vadd.f32 %v171, %v264
      %266 = vdwg.mxu0
      %267 = vmatpush.msra.mxu0 0.0
      %268 = vmatpush.msra.mxu0 0.0
      %269 = vmatpush.msra.mxu0 0.0
      %270 = vmatpush.msra.mxu0 0.0
      %271 = vmatpush.msra.mxu0 0.0
      %272 = vmatpush.msra.mxu0 0.0
      %273 = vmatpush.msra.mxu0 0.0
      %274 = vmatpush.msra.mxu0 0.0
      %275 = vmatpush.msra.mxu0 0.0
      %276 = vmatpush.msra.mxu0 0.0
      %277 = vmatpush.msra.mxu0 0.0
      %278 = vmatpush.msra.mxu0 0.0
      %279 = vmatpush.msra.mxu0 %v162
      %280 = vmatpush.msra.mxu0 %v154
      %281 = vmatpush.msra.mxu0 %v146
      %282 = vmatpush.msra.mxu0 %v138
      %283 = vmatmul.f32.gmra.mxu0 %v185
      %v284 = vpop.f32.mrf.mxu0
      %v285 = vadd.f32 %v172, %v284
      %286 = vdwg.mxu0
      %287 = vmatpush.msra.mxu0 0.0
      %288 = vmatpush.msra.mxu0 0.0
      %289 = vmatpush.msra.mxu0 0.0
      %290 = vmatpush.msra.mxu0 0.0
      %291 = vmatpush.msra.mxu0 0.0
      %292 = vmatpush.msra.mxu0 0.0
      %293 = vmatpush.msra.mxu0 0.0
      %294 = vmatpush.msra.mxu0 0.0
      %295 = vmatpush.msra.mxu0 0.0
      %296 = vmatpush.msra.mxu0 0.0
      %297 = vmatpush.msra.mxu0 0.0
      %298 = vmatpush.msra.mxu0 0.0
      %299 = vmatpush.msra.mxu0 %v163
      %300 = vmatpush.msra.mxu0 %v155
      %301 = vmatpush.msra.mxu0 %v147
      %302 = vmatpush.msra.mxu0 %v139
      %303 = vmatmul.f32.gmra.mxu0 %v185
      %v304 = vpop.f32.mrf.mxu0
      %v305 = vadd.f32 %v173, %v304
      %306 = vdwg.mxu0
      %307 = vmatpush.msra.mxu0 0.0
      %308 = vmatpush.msra.mxu0 0.0
      %309 = vmatpush.msra.mxu0 0.0
      %310 = vmatpush.msra.mxu0 0.0
      %311 = vmatpush.msra.mxu0 0.0
      %312 = vmatpush.msra.mxu0 0.0
      %313 = vmatpush.msra.mxu0 0.0
      %314 = vmatpush.msra.mxu0 0.0
      %315 = vmatpush.msra.mxu0 0.0
      %316 = vmatpush.msra.mxu0 0.0
      %317 = vmatpush.msra.mxu0 0.0
      %318 = vmatpush.msra.mxu0 0.0
      %319 = vmatpush.msra.mxu0 %v164
      %320 = vmatpush.msra.mxu0 %v156
      %321 = vmatpush.msra.mxu0 %v148
      %322 = vmatpush.msra.mxu0 %v140
      %323 = vmatmul.f32.gmra.mxu0 %v185
      %v324 = vpop.f32.mrf.mxu0
      %v325 = vadd.f32 %v174, %v324
      %326 = vdwg.mxu0
      %327 = vmatpush.msra.mxu0 0.0
      %328 = vmatpush.msra.mxu0 0.0
      %329 = vmatpush.msra.mxu0 0.0
      %330 = vmatpush.msra.mxu0 0.0
      %331 = vmatpush.msra.mxu0 0.0
      %332 = vmatpush.msra.mxu0 0.0
      %333 = vmatpush.msra.mxu0 0.0
      %334 = vmatpush.msra.mxu0 0.0
      %335 = vmatpush.msra.mxu0 0.0
      %336 = vmatpush.msra.mxu0 0.0
      %337 = vmatpush.msra.mxu0 0.0
      %338 = vmatpush.msra.mxu0 0.0
      %339 = vmatpush.msra.mxu0 %v165
      %340 = vmatpush.msra.mxu0 %v157
      %341 = vmatpush.msra.mxu0 %v149
      %342 = vmatpush.msra.mxu0 %v141
      %343 = vmatmul.f32.gmra.mxu0 %v185
      %v344 = vpop.f32.mrf.mxu0
      %v345 = vadd.f32 %v175, %v344
      %346 = vdwg.mxu0
      %v347 = vmax.f32 %v205, 0.0
      %v348 = vmax.f32 %v225, 0.0
      %v349 = vmax.f32 %v245, 0.0
      %v350 = vmax.f32 %v265, 0.0
      %v351 = vmax.f32 %v285, 0.0
      %v352 = vmax.f32 %v305, 0.0
      %v353 = vmax.f32 %v325, 0.0
      %v354 = vmax.f32 %v345, 0.0
      %v355 = vld [vmem:[%s4] sm:$0xff]
      %v356 = vld [vmem:[%s4 + $0x8] sm:$0xff]
      %v357 = vld [vmem:[%s4 + $0x10] sm:$0xff]
      %v358 = vld [vmem:[%s4 + $0x18] sm:$0xff]
      %v359 = vld [vmem:[%s4 + $0x20] sm:$0xff]
      %v360 = vld [vmem:[%s4 + $0x28] sm:$0xff]
      %v361 = vld [vmem:[%s4 + $0x30] sm:$0xff]
      %v362 = vld [vmem:[%s4 + $0x38] sm:$0xff]
      %v363 = vld [vmem:[%s4 + $0x40] sm:$0xff]
      %v364 = vld [vmem:[%s4 + $0x48] sm:$0xff]
      %v365 = vld [vmem:[%s4 + $0x50] sm:$0xff]
      %v366 = vld [vmem:[%s4 + $0x58] sm:$0xff]
      %v367 = vld [vmem:[%s4 + $0x60] sm:$0xff]
      %v368 = vld [vmem:[%s4 + $0x68] sm:$0xff]
      %v369 = vld [vmem:[%s4 + $0x70] sm:$0xff]
      %v370 = vld [vmem:[%s4 + $0x78] sm:$0xff]
      %v371 = vld [vmem:[%s4 + $0x80] sm:$0xff]
      %v372 = vld [vmem:[%s4 + $0x88] sm:$0xff]
      %v373 = vld [vmem:[%s4 + $0x90] sm:$0xff]
      %v374 = vld [vmem:[%s4 + $0x98] sm:$0xff]
      %v375 = vld [vmem:[%s4 + $0xa0] sm:$0xff]
      %v376 = vld [vmem:[%s4 + $0xa8] sm:$0xff]
      %v377 = vld [vmem:[%s4 + $0xb0] sm:$0xff]
      %v378 = vld [vmem:[%s4 + $0xb8] sm:$0xff]
      %v379 = vld [vmem:[%s4 + $0xc0] sm:$0xff]
      %v380 = vld [vmem:[%s4 + $0xc8] sm:$0xff]
      %v381 = vld [vmem:[%s4 + $0xd0] sm:$0xff]
      %v382 = vld [vmem:[%s4 + $0xd8] sm:$0xff]
      %v383 = vld [vmem:[%s4 + $0xe0] sm:$0xff]
      %v384 = vld [vmem:[%s4 + $0xe8] sm:$0xff]
      %v385 = vld [vmem:[%s4 + $0xf0] sm:$0xff]
      %v386 = vld [vmem:[%s4 + $0xf8] sm:$0xff]
      %v387 = vld [vmem:[%s4 + $0x100] sm:$0xff]
      %v388 = vld [vmem:[%s4 + $0x108] sm:$0xff]
      %v389 = vld [vmem:[%s4 + $0x110] sm:$0xff]
      %v390 = vld [vmem:[%s4 + $0x118] sm:$0xff]
      %v391 = vld [vmem:[%s4 + $0x120] sm:$0xff]
      %v392 = vld [vmem:[%s4 + $0x128] sm:$0xff]
      %v393 = vld [vmem:[%s4 + $0x130] sm:$0xff]
      %v394 = vld [vmem:[%s4 + $0x138] sm:$0xff]
      %v395 = vld [vmem:[%s4 + $0x140] sm:$0xff]
      %v396 = vld [vmem:[%s4 + $0x148] sm:$0xff]
      %v397 = vld [vmem:[%s4 + $0x150] sm:$0xff]
      %v398 = vld [vmem:[%s4 + $0x158] sm:$0xff]
      %v399 = vld [vmem:[%s4 + $0x160] sm:$0xff]
      %v400 = vld [vmem:[%s4 + $0x168] sm:$0xff]
      %v401 = vld [vmem:[%s4 + $0x170] sm:$0xff]
      %v402 = vld [vmem:[%s4 + $0x178] sm:$0xff]
      %v403 = vld [vmem:[%s4 + $0x180] sm:$0xff]
      %v404 = vld [vmem:[%s4 + $0x188] sm:$0xff]
      %v405 = vld [vmem:[%s4 + $0x190] sm:$0xff]
      %v406 = vld [vmem:[%s4 + $0x198] sm:$0xff]
      %v407 = vld [vmem:[%s4 + $0x1a0] sm:$0xff]
      %v408 = vld [vmem:[%s4 + $0x1a8] sm:$0xff]
      %v409 = vld [vmem:[%s4 + $0x1b0] sm:$0xff]
      %v410 = vld [vmem:[%s4 + $0x1b8] sm:$0xff]
      %v411 = vld [vmem:[%s4 + $0x1c0] sm:$0xff]
      %v412 = vld [vmem:[%s4 + $0x1c8] sm:$0xff]
      %v413 = vld [vmem:[%s4 + $0x1d0] sm:$0xff]
      %v414 = vld [vmem:[%s4 + $0x1d8] sm:$0xff]
      %v415 = vld [vmem:[%s4 + $0x1e0] sm:$0xff]
      %v416 = vld [vmem:[%s4 + $0x1e8] sm:$0xff]
      %v417 = vld [vmem:[%s4 + $0x1f0] sm:$0xff]
      %v418 = vld [vmem:[%s4 + $0x1f8] sm:$0xff]
      %v419 = vld [vmem:[%s4 + $0x200] sm:$0xff]
      %v420 = vld [vmem:[%s4 + $0x208] sm:$0xff]
      %v421 = vld [vmem:[%s4 + $0x210] sm:$0xff]
      %v422 = vld [vmem:[%s4 + $0x218] sm:$0xff]
      %v423 = vld [vmem:[%s4 + $0x220] sm:$0xff]
      %v424 = vld [vmem:[%s4 + $0x228] sm:$0xff]
      %v425 = vld [vmem:[%s4 + $0x230] sm:$0xff]
      %v426 = vld [vmem:[%s4 + $0x238] sm:$0xff]
      %v427 = vld [vmem:[%s4 + $0x240] sm:$0xff]
      %v428 = vld [vmem:[%s4 + $0x248] sm:$0xff]
      %v429 = vld [vmem:[%s4 + $0x250] sm:$0xff]
      %v430 = vld [vmem:[%s4 + $0x258] sm:$0xff]
      %v431 = vld [vmem:[%s4 + $0x260] sm:$0xff]
      %v432 = vld [vmem:[%s4 + $0x268] sm:$0xff]
      %v433 = vld [vmem:[%s4 + $0x270] sm:$0xff]
      %v434 = vld [vmem:[%s4 + $0x278] sm:$0xff]
      %v435 = vld [vmem:[%s4 + $0x280] sm:$0xff]
      %v436 = vld [vmem:[%s4 + $0x288] sm:$0xff]
      %v437 = vld [vmem:[%s4 + $0x290] sm:$0xff]
      %v438 = vld [vmem:[%s4 + $0x298] sm:$0xff]
      %v439 = vld [vmem:[%s4 + $0x2a0] sm:$0xff]
      %v440 = vld [vmem:[%s4 + $0x2a8] sm:$0xff]
      %v441 = vld [vmem:[%s4 + $0x2b0] sm:$0xff]
      %v442 = vld [vmem:[%s4 + $0x2b8] sm:$0xff]
      %v443 = vld [vmem:[%s4 + $0x2c0] sm:$0xff]
      %v444 = vld [vmem:[%s4 + $0x2c8] sm:$0xff]
      %v445 = vld [vmem:[%s4 + $0x2d0] sm:$0xff]
      %v446 = vld [vmem:[%s4 + $0x2d8] sm:$0xff]
      %v447 = vld [vmem:[%s4 + $0x2e0] sm:$0xff]
      %v448 = vld [vmem:[%s4 + $0x2e8] sm:$0xff]
      %v449 = vld [vmem:[%s4 + $0x2f0] sm:$0xff]
      %v450 = vld [vmem:[%s4 + $0x2f8] sm:$0xff]
      %v451 = vld [vmem:[%s4 + $0x300] sm:$0xff]
      %v452 = vld [vmem:[%s4 + $0x308] sm:$0xff]
      %v453 = vld [vmem:[%s4 + $0x310] sm:$0xff]
      %v454 = vld [vmem:[%s4 + $0x318] sm:$0xff]
      %v455 = vld [vmem:[%s4 + $0x320] sm:$0xff]
      %v456 = vld [vmem:[%s4 + $0x328] sm:$0xff]
      %v457 = vld [vmem:[%s4 + $0x330] sm:$0xff]
      %v458 = vld [vmem:[%s4 + $0x338] sm:$0xff]
      %v459 = vld [vmem:[%s4 + $0x340] sm:$0xff]
      %v460 = vld [vmem:[%s4 + $0x348] sm:$0xff]
      %v461 = vld [vmem:[%s4 + $0x350] sm:$0xff]
      %v462 = vld [vmem:[%s4 + $0x358] sm:$0xff]
      %v463 = vld [vmem:[%s4 + $0x360] sm:$0xff]
      %v464 = vld [vmem:[%s4 + $0x368] sm:$0xff]
      %v465 = vld [vmem:[%s4 + $0x370] sm:$0xff]
      %v466 = vld [vmem:[%s4 + $0x378] sm:$0xff]
      %v467 = vld [vmem:[%s4 + $0x380] sm:$0xff]
      %v468 = vld [vmem:[%s4 + $0x388] sm:$0xff]
      %v469 = vld [vmem:[%s4 + $0x390] sm:$0xff]
      %v470 = vld [vmem:[%s4 + $0x398] sm:$0xff]
      %v471 = vld [vmem:[%s4 + $0x3a0] sm:$0xff]
      %v472 = vld [vmem:[%s4 + $0x3a8] sm:$0xff]
      %v473 = vld [vmem:[%s4 + $0x3b0] sm:$0xff]
      %v474 = vld [vmem:[%s4 + $0x3b8] sm:$0xff]
      %v475 = vld [vmem:[%s4 + $0x3c0] sm:$0xff]
      %v476 = vld [vmem:[%s4 + $0x3c8] sm:$0xff]
      %v477 = vld [vmem:[%s4 + $0x3d0] sm:$0xff]
      %v478 = vld [vmem:[%s4 + $0x3d8] sm:$0xff]
      %v479 = vld [vmem:[%s4 + $0x3e0] sm:$0xff]
      %v480 = vld [vmem:[%s4 + $0x3e8] sm:$0xff]
      %v481 = vld [vmem:[%s4 + $0x3f0] sm:$0xff]
      %v482 = vld [vmem:[%s4 + $0x3f8] sm:$0xff]
      %v483 = vld [vmem:[%s5] sm:$0x1]
      %v485 = vperm.slane %v483, 0
      %487 = vmatpush.msra.mxu0 %v370
      %488 = vmatpush.msra.mxu0 %v369
      %489 = vmatpush.msra.mxu0 %v368
      %490 = vmatpush.msra.mxu0 %v367
      %491 = vmatpush.msra.mxu0 %v366
      %492 = vmatpush.msra.mxu0 %v365
      %493 = vmatpush.msra.mxu0 %v364
      %494 = vmatpush.msra.mxu0 %v363
      %495 = vmatpush.msra.mxu0 %v362
      %496 = vmatpush.msra.mxu0 %v361
      %497 = vmatpush.msra.mxu0 %v360
      %498 = vmatpush.msra.mxu0 %v359
      %499 = vmatpush.msra.mxu0 %v358
      %500 = vmatpush.msra.mxu0 %v357
      %501 = vmatpush.msra.mxu0 %v356
      %502 = vmatpush.msra.mxu0 %v355
      %503 = vmatmul.f32.gmra.mxu0 %v347
      %v504 = vpop.f32.mrf.mxu0
      %v505 = vadd.f32 %v485, %v504
      %506 = vdwg.mxu0
      %507 = vmatpush.msra.mxu0 %v386
      %508 = vmatpush.msra.mxu0 %v385
      %509 = vmatpush.msra.mxu0 %v384
      %510 = vmatpush.msra.mxu0 %v383
      %511 = vmatpush.msra.mxu0 %v382
      %512 = vmatpush.msra.mxu0 %v381
      %513 = vmatpush.msra.mxu0 %v380
      %514 = vmatpush.msra.mxu0 %v379
      %515 = vmatpush.msra.mxu0 %v378
      %516 = vmatpush.msra.mxu0 %v377
      %517 = vmatpush.msra.mxu0 %v376
      %518 = vmatpush.msra.mxu0 %v375
      %519 = vmatpush.msra.mxu0 %v374
      %520 = vmatpush.msra.mxu0 %v373
      %521 = vmatpush.msra.mxu0 %v372
      %522 = vmatpush.msra.mxu0 %v371
      %523 = vmatmul.f32.gmra.mxu0 %v348
      %v524 = vpop.f32.mrf.mxu0
      %v525 = vadd.f32 %v505, %v524
      %526 = vdwg.mxu0
      %527 = vmatpush.msra.mxu0 %v402
      %528 = vmatpush.msra.mxu0 %v401
      %529 = vmatpush.msra.mxu0 %v400
      %530 = vmatpush.msra.mxu0 %v399
      %531 = vmatpush.msra.mxu0 %v398
      %532 = vmatpush.msra.mxu0 %v397
      %533 = vmatpush.msra.mxu0 %v396
      %534 = vmatpush.msra.mxu0 %v395
      %535 = vmatpush.msra.mxu0 %v394
      %536 = vmatpush.msra.mxu0 %v393
      %537 = vmatpush.msra.mxu0 %v392
      %538 = vmatpush.msra.mxu0 %v391
      %539 = vmatpush.msra.mxu0 %v390
      %540 = vmatpush.msra.mxu0 %v389
      %541 = vmatpush.msra.mxu0 %v388
      %542 = vmatpush.msra.mxu0 %v387
      %543 = vmatmul.f32.gmra.mxu0 %v349
      %v544 = vpop.f32.mrf.mxu0
      %v545 = vadd.f32 %v525, %v544
      %546 = vdwg.mxu0
      %547 = vmatpush.msra.mxu0 %v418
      %548 = vmatpush.msra.mxu0 %v417
      %549 = vmatpush.msra.mxu0 %v416
      %550 = vmatpush.msra.mxu0 %v415
      %551 = vmatpush.msra.mxu0 %v414
      %552 = vmatpush.msra.mxu0 %v413
      %553 = vmatpush.msra.mxu0 %v412
      %554 = vmatpush.msra.mxu0 %v411
      %555 = vmatpush.msra.mxu0 %v410
      %556 = vmatpush.msra.mxu0 %v409
      %557 = vmatpush.msra.mxu0 %v408
      %558 = vmatpush.msra.mxu0 %v407
      %559 = vmatpush.msra.mxu0 %v406
      %560 = vmatpush.msra.mxu0 %v405
      %561 = vmatpush.msra.mxu0 %v404
      %562 = vmatpush.msra.mxu0 %v403
      %563 = vmatmul.f32.gmra.mxu0 %v350
      %v564 = vpop.f32.mrf.mxu0
      %v565 = vadd.f32 %v545, %v564
      %566 = vdwg.mxu0
      %567 = vmatpush.msra.mxu0 %v434
      %568 = vmatpush.msra.mxu0 %v433
      %569 = vmatpush.msra.mxu0 %v432
      %570 = vmatpush.msra.mxu0 %v431
      %571 = vmatpush.msra.mxu0 %v430
      %572 = vmatpush.msra.mxu0 %v429
      %573 = vmatpush.msra.mxu0 %v428
      %574 = vmatpush.msra.mxu0 %v427
      %575 = vmatpush.msra.mxu0 %v426
      %576 = vmatpush.msra.mxu0 %v425
      %577 = vmatpush.msra.mxu0 %v424
      %578 = vmatpush.msra.mxu0 %v423
      %579 = vmatpush.msra.mxu0 %v422
      %580 = vmatpush.msra.mxu0 %v421
      %581 = vmatpush.msra.mxu0 %v420
      %582 = vmatpush.msra.mxu0 %v419
      %583 = vmatmul.f32.gmra.mxu0 %v351
      %v584 = vpop.f32.mrf.mxu0
      %v585 = vadd.f32 %v565, %v584
      %586 = vdwg.mxu0
      %587 = vmatpush.msra.mxu0 %v450
      %588 = vmatpush.msra.mxu0 %v449
      %589 = vmatpush.msra.mxu0 %v448
      %590 = vmatpush.msra.mxu0 %v447
      %591 = vmatpush.msra.mxu0 %v446
      %592 = vmatpush.msra.mxu0 %v445
      %593 = vmatpush.msra.mxu0 %v444
      %594 = vmatpush.msra.mxu0 %v443
      %595 = vmatpush.msra.mxu0 %v442
      %596 = vmatpush.msra.mxu0 %v441
      %597 = vmatpush.msra.mxu0 %v440
      %598 = vmatpush.msra.mxu0 %v439
      %599 = vmatpush.msra.mxu0 %v438
      %600 = vmatpush.msra.mxu0 %v437
      %601 = vmatpush.msra.mxu0 %v436
      %602 = vmatpush.msra.mxu0 %v435
      %603 = vmatmul.f32.gmra.mxu0 %v352
      %v604 = vpop.f32.mrf.mxu0
      %v605 = vadd.f32 %v585, %v604
      %606 = vdwg.mxu0
      %607 = vmatpush.msra.mxu0 %v466
      %608 = vmatpush.msra.mxu0 %v465
      %609 = vmatpush.msra.mxu0 %v464
      %610 = vmatpush.msra.mxu0 %v463
      %611 = vmatpush.msra.mxu0 %v462
      %612 = vmatpush.msra.mxu0 %v461
      %613 = vmatpush.msra.mxu0 %v460
      %614 = vmatpush.msra.mxu0 %v459
      %615 = vmatpush.msra.mxu0 %v458
      %616 = vmatpush.msra.mxu0 %v457
      %617 = vmatpush.msra.mxu0 %v456
      %618 = vmatpush.msra.mxu0 %v455
      %619 = vmatpush.msra.mxu0 %v454
      %620 = vmatpush.msra.mxu0 %v453
      %621 = vmatpush.msra.mxu0 %v452
      %622 = vmatpush.msra.mxu0 %v451
      %623 = vmatmul.f32.gmra.mxu0 %v353
      %v624 = vpop.f32.mrf.mxu0
      %v625 = vadd.f32 %v605, %v624
      %626 = vdwg.mxu0
      %627 = vmatpush.msra.mxu0 %v482
      %628 = vmatpush.msra.mxu0 %v481
      %629 = vmatpush.msra.mxu0 %v480
      %630 = vmatpush.msra.mxu0 %v479
      %631 = vmatpush.msra.mxu0 %v478
      %632 = vmatpush.msra.mxu0 %v477
      %633 = vmatpush.msra.mxu0 %v476
      %634 = vmatpush.msra.mxu0 %v475
      %635 = vmatpush.msra.mxu0 %v474
      %636 = vmatpush.msra.mxu0 %v473
      %637 = vmatpush.msra.mxu0 %v472
      %638 = vmatpush.msra.mxu0 %v471
      %639 = vmatpush.msra.mxu0 %v470
      %640 = vmatpush.msra.mxu0 %v469
      %641 = vmatpush.msra.mxu0 %v468
      %642 = vmatpush.msra.mxu0 %v467
      %643 = vmatmul.f32.gmra.mxu0 %v354
      %v644 = vpop.f32.mrf.mxu0
      %v645 = vadd.f32 %v625, %v644
      %646 = vdwg.mxu0
      %v647 = vlaneseq
      %v648 = vand.u32 %v647, 127
      %vm649 = vcmp.eq.s32.totalorder %v648, 0
      %v650 = vxor.u32 %v645, 2147483648
      %v651 = vmul.f32 %v650, 1.442695
      %v652 = vpow.pop %v651
      %v653 = vadd.f32 %v652, 1.0
      %v654 = vrcp.pop %v653
      %v655 = vmul.f32 %v653, %v654
      %v656 = vsub.f32 1.0, %v655
      %v657 = vmul.f32 %v654, %v656
      %v658 = vadd.f32 %v654, %v657
      %vm659 = vweird.f32 %v653
      %vm660 = vweird.f32 %v654
      %vm661 = vmor %vm659, %vm660
      %v662 = vsel %vm661, %v654, %v658
      %v663 = vand.u32 2147483647, %v653
      %vm664 = vcmp.eq.f32.partialorder %v663, 8.507059e+37
      %v665 = vand.u32 %v653, 2147483648
      %v666 = vor.u32 1.1754944e-38, %v665
      %v667 = vsel %vm664, %v666, %v662
      %v668 = vmul.f32 1.0, %v667
      %v669 = vsel %vm649, %v645, %v668
      %vm670 = vcmask 9216
      %671 = vst.msk [vmem:[#allocation4] sm:$0x3] %vm670, %v669
    $region33: #{tpu_custom_call.1} parent=1 // pred_fallthru
      _
    // Predicated region
    $region34: #{tpu_custom_call.1} parent=1 // pred_check
      _
    $region35: #{tpu_custom_call.1} parent=1 // pred_check_branch
      %673 = sbr.rel (0) target = $region37
    $region36: #{tpu_custom_call.1} parent=1 // pred_region
      %675 = vsyncadd [#allocation5], 0
      %s677 = sshll.u32 [#allocation4], 4
      %s678 = int_to_ptr.vmem [resolvable:$true] %s677
      %s679 = sshll.u32 %s6, 4
      %s680 = int_to_ptr.hbm [resolvable:$true] %s679
      %682 = dma.vmem_to_hbm [thread:$0]  %s678, 32, %s680, [#allocation5]
    $region37: #{tpu_custom_call.1} parent=1 // pred_fallthru
      _
    // Predicated region
    $region38: #{tpu_custom_call.1} parent=1 // pred_check
      _
    $region39: #{tpu_custom_call.1} parent=1 // pred_check_branch
      %684 = sbr.rel (0) target = $region41
    $region40: #{tpu_custom_call.1} parent=1 // pred_region
      %686 = dma.done [#allocation5], 32
    $region41: #{tpu_custom_call.1} parent=1 // pred_fallthru
      _
    %687 = vsyncpa [#allocation5], 1

// kernel: tpu_custom_call.1
$region0: #{tpu_custom_call.1}
  #allocation0 [shape = 'u32[]', space=smem, size = 0x4, offset = 0x4, fixed_abs, tag = 'smem constant byte address 0x4 - core index']
  #allocation1 [shape = 'u32[72,128]{1,0:T(1,128)}', space=vmem, size = 0x9000, scoped, tag = 'internal scratch']
  #allocation2 [shape = 'f32[2,32]{1,0:T(2,128)}', space=vmem, size = 0x400, scoped, tag = 'scratch operand']
  #allocation3 [shape = 'f32[2,1]{1,0:T(2,128)}', space=vmem, size = 0x400, scoped, tag = 'scratch operand']
  %s0 = inlined_call_operand.vmem [shape: f32[2,8,32], index: 0, kind: input, shape index: {}]
  %s1 = inlined_call_operand.vmem [shape: f32[2,8,1], index: 1, kind: input, shape index: {}]
  %s2 = inlined_call_operand.vmem [shape: f32[32,1024], index: 2, kind: input, shape index: {}]
  %s3 = inlined_call_operand.vmem [shape: f32[1,1024], index: 3, kind: input, shape index: {}]
  %s4 = inlined_call_operand.vmem [shape: f32[1024,2], index: 4, kind: input, shape index: {}]
  %s5 = inlined_call_operand.vmem [shape: f32[1,2], index: 5, kind: input, shape index: {}]
  %s6 = inlined_call_operand.hbm [shape: f32[2,2], index: 6, kind: output, shape index: {}]
  %s7 = sld [smem:[#allocation0]]
  $region42: #{tpu_custom_call.1} parent=0
    _
  %s9 = ssub.s32 1, %s7
  %s10 = scalar_select 0, %s9, %s7
  $region1: #{tpu_custom_call.1} parent=0
    #allocation4 [shape = 'u8[1024]{0}', space=vmem, size = 0x400, scoped, tag = 'output window, operand 0, single buffered']
    #allocation5 [shape = 's32[1]{0}', space=sflag, size = 0x4, scoped, tag = 'scoped memory for tpu_custom_call.1']
    %11 = vsyncpa [#allocation5], 0
    // Predicated region
    $region2: #{tpu_custom_call.1} parent=1 // pred_check
      _
    $region3: #{tpu_custom_call.1} parent=1 // pred_check_branch
      %13 = sbr.rel (0) target = $region5
    $region4: #{tpu_custom_call.1} parent=1 // pred_region
      _
    $region5: #{tpu_custom_call.1} parent=1 // pred_fallthru
      _
    // Predicated region
    $region6: #{tpu_custom_call.1} parent=1 // pred_check
      _
    $region7: #{tpu_custom_call.1} parent=1 // pred_check_branch
      %15 = sbr.rel (0) target = $region9
    $region8: #{tpu_custom_call.1} parent=1 // pred_region
      _
    $region9: #{tpu_custom_call.1} parent=1 // pred_fallthru
      _
    // Predicated region
    $region10: #{tpu_custom_call.1} parent=1 // pred_check
      _
    $region11: #{tpu_custom_call.1} parent=1 // pred_check_branch
      %17 = sbr.rel (0) target = $region13
    $region12: #{tpu_custom_call.1} parent=1 // pred_region
      _
    $region13: #{tpu_custom_call.1} parent=1 // pred_fallthru
      _
    // Predicated region
    $region14: #{tpu_custom_call.1} parent=1 // pred_check
      _
    $region15: #{tpu_custom_call.1} parent=1 // pred_check_branch
      %19 = sbr.rel (0) target = $region17
    $region16: #{tpu_custom_call.1} parent=1 // pred_region
      _
    $region17: #{tpu_custom_call.1} parent=1 // pred_fallthru
      _
    // Predicated region
    $region18: #{tpu_custom_call.1} parent=1 // pred_check
      _
    $region19: #{tpu_custom_call.1} parent=1 // pred_check_branch
      %21 = sbr.rel (0) target = $region21
    $region20: #{tpu_custom_call.1} parent=1 // pred_region
      _
    $region21: #{tpu_custom_call.1} parent=1 // pred_fallthru
      _
    // Predicated region
    $region22: #{tpu_custom_call.1} parent=1 // pred_check
      _
    $region23: #{tpu_custom_call.1} parent=1 // pred_check_branch
      %23 = sbr.rel (0) target = $region25
    $region24: #{tpu_custom_call.1} parent=1 // pred_region
      _
    $region25: #{tpu_custom_call.1} parent=1 // pred_fallthru
      _
    %p24 = scmp.eq.s32.totalorder 0, 0
    // Predicated region
    $region26: #{tpu_custom_call.1} parent=1 // pred_check
      %p25 = pneg %p24
    $region27: #{tpu_custom_call.1} parent=1 // pred_check_branch
      %27 = sbr.rel (%p25) target = $region29
    $region28: #{tpu_custom_call.1} parent=1 // pred_region
      %vm28 = vcmask 254976
      %29 = vst.msk [vmem:[#allocation2] sm:$0x3] %vm28, 0.0
      %vm30 = vcmask 1024
      %31 = vst.msk [vmem:[#allocation3] sm:$0x3] %vm30, 0.0
    $region29: #{tpu_custom_call.1} parent=1 // pred_fallthru
      _
    %v32 = vld [vmem:[%s0] sm:$0xff]
    %v33 = vld [vmem:[%s0 + $0x8] sm:$0xff]
    %v34 = vld [vmem:[%s1] sm:$0xff]
    %v35 = vld [vmem:[%s1 + $0x8] sm:$0xff]
    %vm36 = vcmp.gt.f32.partialorder %v34, 0.0
    %vm37 = vcmp.gt.f32.partialorder %v35, 0.0
    %39 = vset.pattern.permute.xlu0 0
    %40 = vperm.xlu0 %39, %v34
    %v41 = vpop.permute.xlu0 %40
    %44 = vset.pattern.permute.xlu0 0
    %45 = vperm.xlu0 %44, %v35
    %v46 = vpop.permute.xlu0 %45
    %v48 = vmul.f32 %v32, %v41
    %v49 = vmul.f32 %v33, %v46
    %v50 = vsel %vm36, 1, 0
    %v51 = vsel %vm37, 1, 0
    %52 = vset.pattern.permute.xlu0 0
    %53 = vperm.xlu0 %52, %v50
    %v54 = vpop.permute.xlu0 %53
    %55 = vset.pattern.permute.xlu0 0
    %56 = vperm.xlu0 %55, %v51
    %v57 = vpop.permute.xlu0 %56
    %vm58 = vcmp.eq.s32.totalorder %v54, 1
    %vm59 = vcmp.eq.s32.totalorder %v57, 1
    %v60 = vsel %vm58, %v48, 0.0
    %v61 = vsel %vm59, %v49, 0.0
    %v62 = vld [vmem:[#allocation2] sm:$0x3]
    %vm63 = vcmask 261120
    %v64 = vsel %vm63, %v60, 0.0
    %v65 = vrot.slane %v64, 4
    %v66 = vadd.f32 %v64, %v65
    %v67 = vrot.slane %v66, 2
    %v68 = vadd.f32 %v66, %v67
    %v69 = vrot.slane %v68, 1
    %v70 = vadd.f32 %v68, %v69
    %v71 = vsel %vm63, %v61, 0.0
    %v72 = vrot.slane %v71, 4
    %v73 = vadd.f32 %v71, %v72
    %v74 = vrot.slane %v73, 2
    %v75 = vadd.f32 %v73, %v74
    %v76 = vrot.slane %v75, 1
    %v77 = vadd.f32 %v75, %v76
    %vm80 = vcmask 1041409
    %v81 = vsel %vm80, %v77, %v70
    %v83 = vadd.f32 %v62, %v81
    %vm84 = vcmask 254976
    %85 = vst.msk [vmem:[#allocation2] sm:$0x3] %vm84, %v83
    %v86 = vld [vmem:[#allocation3] sm:$0x3]
    %vm87 = vcmask 7168
    %v88 = vsel %vm87, %v34, 0.0
    %v89 = vrot.slane %v88, 4
    %v90 = vadd.f32 %v88, %v89
    %v91 = vrot.slane %v90, 2
    %v92 = vadd.f32 %v90, %v91
    %v93 = vrot.slane %v92, 1
    %v94 = vadd.f32 %v92, %v93
    %v95 = vsel %vm87, %v35, 0.0
    %v96 = vrot.slane %v95, 4
    %v97 = vadd.f32 %v95, %v96
    %v98 = vrot.slane %v97, 2
    %v99 = vadd.f32 %v97, %v98
    %v100 = vrot.slane %v99, 1
    %v101 = vadd.f32 %v99, %v100
    %v104 = vsel %vm80, %v101, %v94
    %v106 = vadd.f32 %v86, %v104
    %vm107 = vcmask 1024
    %108 = vst.msk [vmem:[#allocation3] sm:$0x3] %vm107, %v106
    // Predicated region
    $region30: #{tpu_custom_call.1} parent=1 // pred_check
      %p109 = pneg %p24
    $region31: #{tpu_custom_call.1} parent=1 // pred_check_branch
      %111 = sbr.rel (%p109) target = $region33
    $region32: #{tpu_custom_call.1} parent=1 // pred_region
      %v112 = vld [vmem:[#allocation2] sm:$0x3]
      %v113 = vld [vmem:[#allocation3] sm:$0x3]
      %115 = vset.pattern.permute.xlu0 0
      %116 = vperm.xlu0 %115, %v113
      %v117 = vpop.permute.xlu0 %116
      %v119 = vrcp.pop %v117
      %v120 = vmul.f32 %v117, %v119
      %v121 = vsub.f32 1.0, %v120
      %v122 = vmul.f32 %v119, %v121
      %v123 = vadd.f32 %v119, %v122
      %vm124 = vweird.f32 %v117
      %vm125 = vweird.f32 %v119
      %vm126 = vmor %vm124, %vm125
      %v127 = vsel %vm126, %v119, %v123
      %v128 = vand.u32 2147483647, %v117
      %vm129 = vcmp.eq.f32.partialorder %v128, 8.507059e+37
      %v130 = vand.u32 %v117, 2147483648
      %v131 = vor.u32 1.1754944e-38, %v130
      %v132 = vsel %vm129, %v131, %v127
      %v133 = vmul.f32 %v112, %v132
      %v134 = vld [vmem:[%s2] sm:$0xff]
      %v135 = vld [vmem:[%s2 + $0x8] sm:$0xff]
      %v136 = vld [vmem:[%s2 + $0x10] sm:$0xff]
      %v137 = vld [vmem:[%s2 + $0x18] sm:$0xff]
      %v138 = vld [vmem:[%s2 + $0x20] sm:$0xff]
      %v139 = vld [vmem:[%s2 + $0x28] sm:$0xff]
      %v140 = vld [vmem:[%s2 + $0x30] sm:$0xff]
      %v141 = vld [vmem:[%s2 + $0x38] sm:$0xff]
      %v142 = vld [vmem:[%s2 + $0x40] sm:$0xff]
      %v143 = vld [vmem:[%s2 + $0x48] sm:$0xff]
      %v144 = vld [vmem:[%s2 + $0x50] sm:$0xff]
      %v145 = vld [vmem:[%s2 + $0x58] sm:$0xff]
      %v146 = vld [vmem:[%s2 + $0x60] sm:$0xff]
      %v147 = vld [vmem:[%s2 + $0x68] sm:$0xff]
      %v148 = vld [vmem:[%s2 + $0x70] sm:$0xff]
      %v149 = vld [vmem:[%s2 + $0x78] sm:$0xff]
      %v150 = vld [vmem:[%s2 + $0x80] sm:$0xff]
      %v151 = vld [vmem:[%s2 + $0x88] sm:$0xff]
      %v152 = vld [vmem:[%s2 + $0x90] sm:$0xff]
      %v153 = vld [vmem:[%s2 + $0x98] sm:$0xff]
      %v154 = vld [vmem:[%s2 + $0xa0] sm:$0xff]
      %v155 = vld [vmem:[%s2 + $0xa8] sm:$0xff]
      %v156 = vld [vmem:[%s2 + $0xb0] sm:$0xff]
      %v157 = vld [vmem:[%s2 + $0xb8] sm:$0xff]
      %v158 = vld [vmem:[%s2 + $0xc0] sm:$0xff]
      %v159 = vld [vmem:[%s2 + $0xc8] sm:$0xff]
      %v160 = vld [vmem:[%s2 + $0xd0] sm:$0xff]
      %v161 = vld [vmem:[%s2 + $0xd8] sm:$0xff]
      %v162 = vld [vmem:[%s2 + $0xe0] sm:$0xff]
      %v163 = vld [vmem:[%s2 + $0xe8] sm:$0xff]
      %v164 = vld [vmem:[%s2 + $0xf0] sm:$0xff]
      %v165 = vld [vmem:[%s2 + $0xf8] sm:$0xff]
      %v166 = vld [vmem:[%s3] sm:$0xff]
      %v168 = vperm.slane %v166, 0
      %v169 = vperm.slane %v166, 1
      %v170 = vperm.slane %v166, 2
      %v171 = vperm.slane %v166, 3
      %v172 = vperm.slane %v166, 4
      %v173 = vperm.slane %v166, 5
      %v174 = vperm.slane %v166, 6
      %v175 = vperm.slane %v166, 7
      %v185 = vsel %vm63, %v133, 0
      %187 = vmatpush.msra.mxu0 0.0
      %188 = vmatpush.msra.mxu0 0.0
      %189 = vmatpush.msra.mxu0 0.0
      %190 = vmatpush.msra.mxu0 0.0
      %191 = vmatpush.msra.mxu0 0.0
      %192 = vmatpush.msra.mxu0 0.0
      %193 = vmatpush.msra.mxu0 0.0
      %194 = vmatpush.msra.mxu0 0.0
      %195 = vmatpush.msra.mxu0 0.0
      %196 = vmatpush.msra.mxu0 0.0
      %197 = vmatpush.msra.mxu0 0.0
      %198 = vmatpush.msra.mxu0 0.0
      %199 = vmatpush.msra.mxu0 %v158
      %200 = vmatpush.msra.mxu0 %v150
      %201 = vmatpush.msra.mxu0 %v142
      %202 = vmatpush.msra.mxu0 %v134
      %203 = vmatmul.f32.gmra.mxu0 %v185
      %v204 = vpop.f32.mrf.mxu0
      %v205 = vadd.f32 %v168, %v204
      %206 = vdwg.mxu0
      %207 = vmatpush.msra.mxu0 0.0
      %208 = vmatpush.msra.mxu0 0.0
      %209 = vmatpush.msra.mxu0 0.0
      %210 = vmatpush.msra.mxu0 0.0
      %211 = vmatpush.msra.mxu0 0.0
      %212 = vmatpush.msra.mxu0 0.0
      %213 = vmatpush.msra.mxu0 0.0
      %214 = vmatpush.msra.mxu0 0.0
      %215 = vmatpush.msra.mxu0 0.0
      %216 = vmatpush.msra.mxu0 0.0
      %217 = vmatpush.msra.mxu0 0.0
      %218 = vmatpush.msra.mxu0 0.0
      %219 = vmatpush.msra.mxu0 %v159
      %220 = vmatpush.msra.mxu0 %v151
      %221 = vmatpush.msra.mxu0 %v143
      %222 = vmatpush.msra.mxu0 %v135
      %223 = vmatmul.f32.gmra.mxu0 %v185
      %v224 = vpop.f32.mrf.mxu0
      %v225 = vadd.f32 %v169, %v224
      %226 = vdwg.mxu0
      %227 = vmatpush.msra.mxu0 0.0
      %228 = vmatpush.msra.mxu0 0.0
      %229 = vmatpush.msra.mxu0 0.0
      %230 = vmatpush.msra.mxu0 0.0
      %231 = vmatpush.msra.mxu0 0.0
      %232 = vmatpush.msra.mxu0 0.0
      %233 = vmatpush.msra.mxu0 0.0
      %234 = vmatpush.msra.mxu0 0.0
      %235 = vmatpush.msra.mxu0 0.0
      %236 = vmatpush.msra.mxu0 0.0
      %237 = vmatpush.msra.mxu0 0.0
      %238 = vmatpush.msra.mxu0 0.0
      %239 = vmatpush.msra.mxu0 %v160
      %240 = vmatpush.msra.mxu0 %v152
      %241 = vmatpush.msra.mxu0 %v144
      %242 = vmatpush.msra.mxu0 %v136
      %243 = vmatmul.f32.gmra.mxu0 %v185
      %v244 = vpop.f32.mrf.mxu0
      %v245 = vadd.f32 %v170, %v244
      %246 = vdwg.mxu0
      %247 = vmatpush.msra.mxu0 0.0
      %248 = vmatpush.msra.mxu0 0.0
      %249 = vmatpush.msra.mxu0 0.0
      %250 = vmatpush.msra.mxu0 0.0
      %251 = vmatpush.msra.mxu0 0.0
      %252 = vmatpush.msra.mxu0 0.0
      %253 = vmatpush.msra.mxu0 0.0
      %254 = vmatpush.msra.mxu0 0.0
      %255 = vmatpush.msra.mxu0 0.0
      %256 = vmatpush.msra.mxu0 0.0
      %257 = vmatpush.msra.mxu0 0.0
      %258 = vmatpush.msra.mxu0 0.0
      %259 = vmatpush.msra.mxu0 %v161
      %260 = vmatpush.msra.mxu0 %v153
      %261 = vmatpush.msra.mxu0 %v145
      %262 = vmatpush.msra.mxu0 %v137
      %263 = vmatmul.f32.gmra.mxu0 %v185
      %v264 = vpop.f32.mrf.mxu0
      %v265 = vadd.f32 %v171, %v264
      %266 = vdwg.mxu0
      %267 = vmatpush.msra.mxu0 0.0
      %268 = vmatpush.msra.mxu0 0.0
      %269 = vmatpush.msra.mxu0 0.0
      %270 = vmatpush.msra.mxu0 0.0
      %271 = vmatpush.msra.mxu0 0.0
      %272 = vmatpush.msra.mxu0 0.0
      %273 = vmatpush.msra.mxu0 0.0
      %274 = vmatpush.msra.mxu0 0.0
      %275 = vmatpush.msra.mxu0 0.0
      %276 = vmatpush.msra.mxu0 0.0
      %277 = vmatpush.msra.mxu0 0.0
      %278 = vmatpush.msra.mxu0 0.0
      %279 = vmatpush.msra.mxu0 %v162
      %280 = vmatpush.msra.mxu0 %v154
      %281 = vmatpush.msra.mxu0 %v146
      %282 = vmatpush.msra.mxu0 %v138
      %283 = vmatmul.f32.gmra.mxu0 %v185
      %v284 = vpop.f32.mrf.mxu0
      %v285 = vadd.f32 %v172, %v284
      %286 = vdwg.mxu0
      %287 = vmatpush.msra.mxu0 0.0
      %288 = vmatpush.msra.mxu0 0.0
      %289 = vmatpush.msra.mxu0 0.0
      %290 = vmatpush.msra.mxu0 0.0
      %291 = vmatpush.msra.mxu0 0.0
      %292 = vmatpush.msra.mxu0 0.0
      %293 = vmatpush.msra.mxu0 0.0
      %294 = vmatpush.msra.mxu0 0.0
      %295 = vmatpush.msra.mxu0 0.0
      %296 = vmatpush.msra.mxu0 0.0
      %297 = vmatpush.msra.mxu0 0.0
      %298 = vmatpush.msra.mxu0 0.0
      %299 = vmatpush.msra.mxu0 %v163
      %300 = vmatpush.msra.mxu0 %v155
      %301 = vmatpush.msra.mxu0 %v147
      %302 = vmatpush.msra.mxu0 %v139
      %303 = vmatmul.f32.gmra.mxu0 %v185
      %v304 = vpop.f32.mrf.mxu0
      %v305 = vadd.f32 %v173, %v304
      %306 = vdwg.mxu0
      %307 = vmatpush.msra.mxu0 0.0
      %308 = vmatpush.msra.mxu0 0.0
      %309 = vmatpush.msra.mxu0 0.0
      %310 = vmatpush.msra.mxu0 0.0
      %311 = vmatpush.msra.mxu0 0.0
      %312 = vmatpush.msra.mxu0 0.0
      %313 = vmatpush.msra.mxu0 0.0
      %314 = vmatpush.msra.mxu0 0.0
      %315 = vmatpush.msra.mxu0 0.0
      %316 = vmatpush.msra.mxu0 0.0
      %317 = vmatpush.msra.mxu0 0.0
      %318 = vmatpush.msra.mxu0 0.0
      %319 = vmatpush.msra.mxu0 %v164
      %320 = vmatpush.msra.mxu0 %v156
      %321 = vmatpush.msra.mxu0 %v148
      %322 = vmatpush.msra.mxu0 %v140
      %323 = vmatmul.f32.gmra.mxu0 %v185
      %v324 = vpop.f32.mrf.mxu0
      %v325 = vadd.f32 %v174, %v324
      %326 = vdwg.mxu0
      %327 = vmatpush.msra.mxu0 0.0
      %328 = vmatpush.msra.mxu0 0.0
      %329 = vmatpush.msra.mxu0 0.0
      %330 = vmatpush.msra.mxu0 0.0
      %331 = vmatpush.msra.mxu0 0.0
      %332 = vmatpush.msra.mxu0 0.0
      %333 = vmatpush.msra.mxu0 0.0
      %334 = vmatpush.msra.mxu0 0.0
      %335 = vmatpush.msra.mxu0 0.0
      %336 = vmatpush.msra.mxu0 0.0
      %337 = vmatpush.msra.mxu0 0.0
      %338 = vmatpush.msra.mxu0 0.0
      %339 = vmatpush.msra.mxu0 %v165
      %340 = vmatpush.msra.mxu0 %v157
      %341 = vmatpush.msra.mxu0 %v149
      %342 = vmatpush.msra.mxu0 %v141
      %343 = vmatmul.f32.gmra.mxu0 %v185
      %v344 = vpop.f32.mrf.mxu0
      %v345 = vadd.f32 %v175, %v344
      %346 = vdwg.mxu0
      %v347 = vmax.f32 %v205, 0.0
      %v348 = vmax.f32 %v225, 0.0
      %v349 = vmax.f32 %v245, 0.0
      %v350 = vmax.f32 %v265, 0.0
      %v351 = vmax.f32 %v285, 0.0
      %v352 = vmax.f32 %v305, 0.0
      %v353 = vmax.f32 %v325, 0.0
      %v354 = vmax.f32 %v345, 0.0
      %v355 = vld [vmem:[%s4] sm:$0xff]
      %v356 = vld [vmem:[%s4 + $0x8] sm:$0xff]
      %v357 = vld [vmem:[%s4 + $0x10] sm:$0xff]
      %v358 = vld [vmem:[%s4 + $0x18] sm:$0xff]
      %v359 = vld [vmem:[%s4 + $0x20] sm:$0xff]
      %v360 = vld [vmem:[%s4 + $0x28] sm:$0xff]
      %v361 = vld [vmem:[%s4 + $0x30] sm:$0xff]
      %v362 = vld [vmem:[%s4 + $0x38] sm:$0xff]
      %v363 = vld [vmem:[%s4 + $0x40] sm:$0xff]
      %v364 = vld [vmem:[%s4 + $0x48] sm:$0xff]
      %v365 = vld [vmem:[%s4 + $0x50] sm:$0xff]
      %v366 = vld [vmem:[%s4 + $0x58] sm:$0xff]
      %v367 = vld [vmem:[%s4 + $0x60] sm:$0xff]
      %v368 = vld [vmem:[%s4 + $0x68] sm:$0xff]
      %v369 = vld [vmem:[%s4 + $0x70] sm:$0xff]
      %v370 = vld [vmem:[%s4 + $0x78] sm:$0xff]
      %v371 = vld [vmem:[%s4 + $0x80] sm:$0xff]
      %v372 = vld [vmem:[%s4 + $0x88] sm:$0xff]
      %v373 = vld [vmem:[%s4 + $0x90] sm:$0xff]
      %v374 = vld [vmem:[%s4 + $0x98] sm:$0xff]
      %v375 = vld [vmem:[%s4 + $0xa0] sm:$0xff]
      %v376 = vld [vmem:[%s4 + $0xa8] sm:$0xff]
      %v377 = vld [vmem:[%s4 + $0xb0] sm:$0xff]
      %v378 = vld [vmem:[%s4 + $0xb8] sm:$0xff]
      %v379 = vld [vmem:[%s4 + $0xc0] sm:$0xff]
      %v380 = vld [vmem:[%s4 + $0xc8] sm:$0xff]
      %v381 = vld [vmem:[%s4 + $0xd0] sm:$0xff]
      %v382 = vld [vmem:[%s4 + $0xd8] sm:$0xff]
      %v383 = vld [vmem:[%s4 + $0xe0] sm:$0xff]
      %v384 = vld [vmem:[%s4 + $0xe8] sm:$0xff]
      %v385 = vld [vmem:[%s4 + $0xf0] sm:$0xff]
      %v386 = vld [vmem:[%s4 + $0xf8] sm:$0xff]
      %v387 = vld [vmem:[%s4 + $0x100] sm:$0xff]
      %v388 = vld [vmem:[%s4 + $0x108] sm:$0xff]
      %v389 = vld [vmem:[%s4 + $0x110] sm:$0xff]
      %v390 = vld [vmem:[%s4 + $0x118] sm:$0xff]
      %v391 = vld [vmem:[%s4 + $0x120] sm:$0xff]
      %v392 = vld [vmem:[%s4 + $0x128] sm:$0xff]
      %v393 = vld [vmem:[%s4 + $0x130] sm:$0xff]
      %v394 = vld [vmem:[%s4 + $0x138] sm:$0xff]
      %v395 = vld [vmem:[%s4 + $0x140] sm:$0xff]
      %v396 = vld [vmem:[%s4 + $0x148] sm:$0xff]
      %v397 = vld [vmem:[%s4 + $0x150] sm:$0xff]
      %v398 = vld [vmem:[%s4 + $0x158] sm:$0xff]
      %v399 = vld [vmem:[%s4 + $0x160] sm:$0xff]
      %v400 = vld [vmem:[%s4 + $0x168] sm:$0xff]
      %v401 = vld [vmem:[%s4 + $0x170] sm:$0xff]
      %v402 = vld [vmem:[%s4 + $0x178] sm:$0xff]
      %v403 = vld [vmem:[%s4 + $0x180] sm:$0xff]
      %v404 = vld [vmem:[%s4 + $0x188] sm:$0xff]
      %v405 = vld [vmem:[%s4 + $0x190] sm:$0xff]
      %v406 = vld [vmem:[%s4 + $0x198] sm:$0xff]
      %v407 = vld [vmem:[%s4 + $0x1a0] sm:$0xff]
      %v408 = vld [vmem:[%s4 + $0x1a8] sm:$0xff]
      %v409 = vld [vmem:[%s4 + $0x1b0] sm:$0xff]
      %v410 = vld [vmem:[%s4 + $0x1b8] sm:$0xff]
      %v411 = vld [vmem:[%s4 + $0x1c0] sm:$0xff]
      %v412 = vld [vmem:[%s4 + $0x1c8] sm:$0xff]
      %v413 = vld [vmem:[%s4 + $0x1d0] sm:$0xff]
      %v414 = vld [vmem:[%s4 + $0x1d8] sm:$0xff]
      %v415 = vld [vmem:[%s4 + $0x1e0] sm:$0xff]
      %v416 = vld [vmem:[%s4 + $0x1e8] sm:$0xff]
      %v417 = vld [vmem:[%s4 + $0x1f0] sm:$0xff]
      %v418 = vld [vmem:[%s4 + $0x1f8] sm:$0xff]
      %v419 = vld [vmem:[%s4 + $0x200] sm:$0xff]
      %v420 = vld [vmem:[%s4 + $0x208] sm:$0xff]
      %v421 = vld [vmem:[%s4 + $0x210] sm:$0xff]
      %v422 = vld [vmem:[%s4 + $0x218] sm:$0xff]
      %v423 = vld [vmem:[%s4 + $0x220] sm:$0xff]
      %v424 = vld [vmem:[%s4 + $0x228] sm:$0xff]
      %v425 = vld [vmem:[%s4 + $0x230] sm:$0xff]
      %v426 = vld [vmem:[%s4 + $0x238] sm:$0xff]
      %v427 = vld [vmem:[%s4 + $0x240] sm:$0xff]
      %v428 = vld [vmem:[%s4 + $0x248] sm:$0xff]
      %v429 = vld [vmem:[%s4 + $0x250] sm:$0xff]
      %v430 = vld [vmem:[%s4 + $0x258] sm:$0xff]
      %v431 = vld [vmem:[%s4 + $0x260] sm:$0xff]
      %v432 = vld [vmem:[%s4 + $0x268] sm:$0xff]
      %v433 = vld [vmem:[%s4 + $0x270] sm:$0xff]
      %v434 = vld [vmem:[%s4 + $0x278] sm:$0xff]
      %v435 = vld [vmem:[%s4 + $0x280] sm:$0xff]
      %v436 = vld [vmem:[%s4 + $0x288] sm:$0xff]
      %v437 = vld [vmem:[%s4 + $0x290] sm:$0xff]
      %v438 = vld [vmem:[%s4 + $0x298] sm:$0xff]
      %v439 = vld [vmem:[%s4 + $0x2a0] sm:$0xff]
      %v440 = vld [vmem:[%s4 + $0x2a8] sm:$0xff]
      %v441 = vld [vmem:[%s4 + $0x2b0] sm:$0xff]
      %v442 = vld [vmem:[%s4 + $0x2b8] sm:$0xff]
      %v443 = vld [vmem:[%s4 + $0x2c0] sm:$0xff]
      %v444 = vld [vmem:[%s4 + $0x2c8] sm:$0xff]
      %v445 = vld [vmem:[%s4 + $0x2d0] sm:$0xff]
      %v446 = vld [vmem:[%s4 + $0x2d8] sm:$0xff]
      %v447 = vld [vmem:[%s4 + $0x2e0] sm:$0xff]
      %v448 = vld [vmem:[%s4 + $0x2e8] sm:$0xff]
      %v449 = vld [vmem:[%s4 + $0x2f0] sm:$0xff]
      %v450 = vld [vmem:[%s4 + $0x2f8] sm:$0xff]
      %v451 = vld [vmem:[%s4 + $0x300] sm:$0xff]
      %v452 = vld [vmem:[%s4 + $0x308] sm:$0xff]
      %v453 = vld [vmem:[%s4 + $0x310] sm:$0xff]
      %v454 = vld [vmem:[%s4 + $0x318] sm:$0xff]
      %v455 = vld [vmem:[%s4 + $0x320] sm:$0xff]
      %v456 = vld [vmem:[%s4 + $0x328] sm:$0xff]
      %v457 = vld [vmem:[%s4 + $0x330] sm:$0xff]
      %v458 = vld [vmem:[%s4 + $0x338] sm:$0xff]
      %v459 = vld [vmem:[%s4 + $0x340] sm:$0xff]
      %v460 = vld [vmem:[%s4 + $0x348] sm:$0xff]
      %v461 = vld [vmem:[%s4 + $0x350] sm:$0xff]
      %v462 = vld [vmem:[%s4 + $0x358] sm:$0xff]
      %v463 = vld [vmem:[%s4 + $0x360] sm:$0xff]
      %v464 = vld [vmem:[%s4 + $0x368] sm:$0xff]
      %v465 = vld [vmem:[%s4 + $0x370] sm:$0xff]
      %v466 = vld [vmem:[%s4 + $0x378] sm:$0xff]
      %v467 = vld [vmem:[%s4 + $0x380] sm:$0xff]
      %v468 = vld [vmem:[%s4 + $0x388] sm:$0xff]
      %v469 = vld [vmem:[%s4 + $0x390] sm:$0xff]
      %v470 = vld [vmem:[%s4 + $0x398] sm:$0xff]
      %v471 = vld [vmem:[%s4 + $0x3a0] sm:$0xff]
      %v472 = vld [vmem:[%s4 + $0x3a8] sm:$0xff]
      %v473 = vld [vmem:[%s4 + $0x3b0] sm:$0xff]
      %v474 = vld [vmem:[%s4 + $0x3b8] sm:$0xff]
      %v475 = vld [vmem:[%s4 + $0x3c0] sm:$0xff]
      %v476 = vld [vmem:[%s4 + $0x3c8] sm:$0xff]
      %v477 = vld [vmem:[%s4 + $0x3d0] sm:$0xff]
      %v478 = vld [vmem:[%s4 + $0x3d8] sm:$0xff]
      %v479 = vld [vmem:[%s4 + $0x3e0] sm:$0xff]
      %v480 = vld [vmem:[%s4 + $0x3e8] sm:$0xff]
      %v481 = vld [vmem:[%s4 + $0x3f0] sm:$0xff]
      %v482 = vld [vmem:[%s4 + $0x3f8] sm:$0xff]
      %v483 = vld [vmem:[%s5] sm:$0x1]
      %v485 = vperm.slane %v483, 0
      %487 = vmatpush.msra.mxu0 %v370
      %488 = vmatpush.msra.mxu0 %v369
      %489 = vmatpush.msra.mxu0 %v368
      %490 = vmatpush.msra.mxu0 %v367
      %491 = vmatpush.msra.mxu0 %v366
      %492 = vmatpush.msra.mxu0 %v365
      %493 = vmatpush.msra.mxu0 %v364
      %494 = vmatpush.msra.mxu0 %v363
      %495 = vmatpush.msra.mxu0 %v362
      %496 = vmatpush.msra.mxu0 %v361
      %497 = vmatpush.msra.mxu0 %v360
      %498 = vmatpush.msra.mxu0 %v359
      %499 = vmatpush.msra.mxu0 %v358
      %500 = vmatpush.msra.mxu0 %v357
      %501 = vmatpush.msra.mxu0 %v356
      %502 = vmatpush.msra.mxu0 %v355
      %503 = vmatmul.f32.gmra.mxu0 %v347
      %v504 = vpop.f32.mrf.mxu0
      %v505 = vadd.f32 %v485, %v504
      %506 = vdwg.mxu0
      %507 = vmatpush.msra.mxu0 %v386
      %508 = vmatpush.msra.mxu0 %v385
      %509 = vmatpush.msra.mxu0 %v384
      %510 = vmatpush.msra.mxu0 %v383
      %511 = vmatpush.msra.mxu0 %v382
      %512 = vmatpush.msra.mxu0 %v381
      %513 = vmatpush.msra.mxu0 %v380
      %514 = vmatpush.msra.mxu0 %v379
      %515 = vmatpush.msra.mxu0 %v378
      %516 = vmatpush.msra.mxu0 %v377
      %517 = vmatpush.msra.mxu0 %v376
      %518 = vmatpush.msra.mxu0 %v375
      %519 = vmatpush.msra.mxu0 %v374
      %520 = vmatpush.msra.mxu0 %v373
      %521 = vmatpush.msra.mxu0 %v372
      %522 = vmatpush.msra.mxu0 %v371
      %523 = vmatmul.f32.gmra.mxu0 %v348
      %v524 = vpop.f32.mrf.mxu0
      %v525 = vadd.f32 %v505, %v524
      %526 = vdwg.mxu0
      %527 = vmatpush.msra.mxu0 %v402
      %528 = vmatpush.msra.mxu0 %v401
      %529 = vmatpush.msra.mxu0 %v400
      %530 = vmatpush.msra.mxu0 %v399
      %531 = vmatpush.msra.mxu0 %v398
      %532 = vmatpush.msra.mxu0 %v397
      %533 = vmatpush.msra.mxu0 %v396
      %534 = vmatpush.msra.mxu0 %v395
      %535 = vmatpush.msra.mxu0 %v394
      %536 = vmatpush.msra.mxu0 %v393
      %537 = vmatpush.msra.mxu0 %v392
      %538 = vmatpush.msra.mxu0 %v391
      %539 = vmatpush.msra.mxu0 %v390
      %540 = vmatpush.msra.mxu0 %v389
      %541 = vmatpush.msra.mxu0 %v388
      %542 = vmatpush.msra.mxu0 %v387
      %543 = vmatmul.f32.gmra.mxu0 %v349
      %v544 = vpop.f32.mrf.mxu0
      %v545 = vadd.f32 %v525, %v544
      %546 = vdwg.mxu0
      %547 = vmatpush.msra.mxu0 %v418
      %548 = vmatpush.msra.mxu0 %v417
      %549 = vmatpush.msra.mxu0 %v416
      %550 = vmatpush.msra.mxu0 %v415
      %551 = vmatpush.msra.mxu0 %v414
      %552 = vmatpush.msra.mxu0 %v413
      %553 = vmatpush.msra.mxu0 %v412
      %554 = vmatpush.msra.mxu0 %v411
      %555 = vmatpush.msra.mxu0 %v410
      %556 = vmatpush.msra.mxu0 %v409
      %557 = vmatpush.msra.mxu0 %v408
      %558 = vmatpush.msra.mxu0 %v407
      %559 = vmatpush.msra.mxu0 %v406
      %560 = vmatpush.msra.mxu0 %v405
      %561 = vmatpush.msra.mxu0 %v404
      %562 = vmatpush.msra.mxu0 %v403
      %563 = vmatmul.f32.gmra.mxu0 %v350
      %v564 = vpop.f32.mrf.mxu0
      %v565 = vadd.f32 %v545, %v564
      %566 = vdwg.mxu0
      %567 = vmatpush.msra.mxu0 %v434
      %568 = vmatpush.msra.mxu0 %v433
      %569 = vmatpush.msra.mxu0 %v432
      %570 = vmatpush.msra.mxu0 %v431
      %571 = vmatpush.msra.mxu0 %v430
      %572 = vmatpush.msra.mxu0 %v429
      %573 = vmatpush.msra.mxu0 %v428
      %574 = vmatpush.msra.mxu0 %v427
      %575 = vmatpush.msra.mxu0 %v426
      %576 = vmatpush.msra.mxu0 %v425
      %577 = vmatpush.msra.mxu0 %v424
      %578 = vmatpush.msra.mxu0 %v423
      %579 = vmatpush.msra.mxu0 %v422
      %580 = vmatpush.msra.mxu0 %v421
      %581 = vmatpush.msra.mxu0 %v420
      %582 = vmatpush.msra.mxu0 %v419
      %583 = vmatmul.f32.gmra.mxu0 %v351
      %v584 = vpop.f32.mrf.mxu0
      %v585 = vadd.f32 %v565, %v584
      %586 = vdwg.mxu0
      %587 = vmatpush.msra.mxu0 %v450
      %588 = vmatpush.msra.mxu0 %v449
      %589 = vmatpush.msra.mxu0 %v448
      %590 = vmatpush.msra.mxu0 %v447
      %591 = vmatpush.msra.mxu0 %v446
      %592 = vmatpush.msra.mxu0 %v445
      %593 = vmatpush.msra.mxu0 %v444
      %594 = vmatpush.msra.mxu0 %v443
      %595 = vmatpush.msra.mxu0 %v442
      %596 = vmatpush.msra.mxu0 %v441
      %597 = vmatpush.msra.mxu0 %v440
      %598 = vmatpush.msra.mxu0 %v439
      %599 = vmatpush.msra.mxu0 %v438
      %600 = vmatpush.msra.mxu0 %v437
      %601 = vmatpush.msra.mxu0 %v436
      %602 = vmatpush.msra.mxu0 %v435
      %603 = vmatmul.f32.gmra.mxu0 %v352
      %v604 = vpop.f32.mrf.mxu0
      %v605 = vadd.f32 %v585, %v604
      %606 = vdwg.mxu0
      %607 = vmatpush.msra.mxu0 %v466
      %608 = vmatpush.msra.mxu0 %v465
      %609 = vmatpush.msra.mxu0 %v464
      %610 = vmatpush.msra.mxu0 %v463
      %611 = vmatpush.msra.mxu0 %v462
      %612 = vmatpush.msra.mxu0 %v461
      %613 = vmatpush.msra.mxu0 %v460
      %614 = vmatpush.msra.mxu0 %v459
      %615 = vmatpush.msra.mxu0 %v458
      %616 = vmatpush.msra.mxu0 %v457
      %617 = vmatpush.msra.mxu0 %v456
      %618 = vmatpush.msra.mxu0 %v455
      %619 = vmatpush.msra.mxu0 %v454
      %620 = vmatpush.msra.mxu0 %v453
      %621 = vmatpush.msra.mxu0 %v452
      %622 = vmatpush.msra.mxu0 %v451
      %623 = vmatmul.f32.gmra.mxu0 %v353
      %v624 = vpop.f32.mrf.mxu0
      %v625 = vadd.f32 %v605, %v624
      %626 = vdwg.mxu0
      %627 = vmatpush.msra.mxu0 %v482
      %628 = vmatpush.msra.mxu0 %v481
      %629 = vmatpush.msra.mxu0 %v480
      %630 = vmatpush.msra.mxu0 %v479
      %631 = vmatpush.msra.mxu0 %v478
      %632 = vmatpush.msra.mxu0 %v477
      %633 = vmatpush.msra.mxu0 %v476
      %634 = vmatpush.msra.mxu0 %v475
      %635 = vmatpush.msra.mxu0 %v474
      %636 = vmatpush.msra.mxu0 %v473
      %637 = vmatpush.msra.mxu0 %v472
      %638 = vmatpush.msra.mxu0 %v471
      %639 = vmatpush.msra.mxu0 %v470
      %640 = vmatpush.msra.mxu0 %v469
      %641 = vmatpush.msra.mxu0 %v468
      %642 = vmatpush.msra.mxu0 %v467
      %643 = vmatmul.f32.gmra.mxu0 %v354
      %v644 = vpop.f32.mrf.mxu0
      %v645 = vadd.f32 %v625, %v644
      %646 = vdwg.mxu0
      %v647 = vlaneseq
      %v648 = vand.u32 %v647, 127
      %vm649 = vcmp.eq.s32.totalorder %v648, 0
      %v650 = vxor.u32 %v645, 2147483648
      %v651 = vmul.f32 %v650, 1.442695
      %v652 = vpow.pop %v651
      %v653 = vadd.f32 %v652, 1.0
      %v654 = vrcp.pop %v653
      %v655 = vmul.f32 %v653, %v654
      %v656 = vsub.f32 1.0, %v655
      %v657 = vmul.f32 %v654, %v656
      %v658 = vadd.f32 %v654, %v657
      %vm659 = vweird.f32 %v653
      %vm660 = vweird.f32 %v654
      %vm661 = vmor %vm659, %vm660
      %v662 = vsel %vm661, %v654, %v658
      %v663 = vand.u32 2147483647, %v653
      %vm664 = vcmp.eq.f32.partialorder %v663, 8.507059e+37
      %v665 = vand.u32 %v653, 2147483648
      %v666 = vor.u32 1.1754944e-38, %v665
      %v667 = vsel %vm664, %v666, %v662
      %v668 = vmul.f32 1.0, %v667
      %v669 = vsel %vm649, %v645, %v668
      %vm670 = vcmask 9216
      %671 = vst.msk [vmem:[#allocation4] sm:$0x3] %vm670, %v669
    $region33: #{tpu_custom_call.1} parent=1 // pred_fallthru
      _
    // Predicated region
    $region34: #{tpu_custom_call.1} parent=1 // pred_check
      _
    $region35: #{tpu_custom_call.1} parent=1 // pred_check_branch
      %673 = sbr.rel (0) target = $region37
    $region36: #{tpu_custom_call.1} parent=1 // pred_region
      %675 = vsyncadd [#allocation5], 0
      %s677 = sshll.u32 [#allocation4], 4
      %s678 = int_to_ptr.vmem [resolvable:$true] %s677
      %s679 = sshll.u32 %s6, 4
      %s680 = int_to_ptr.hbm [resolvable:$true] %s679
      %682 = dma.vmem_to_hbm [thread:$0]  %s678, 32, %s680, [#allocation5]
    $region37: #{tpu_custom_call.1} parent=1 // pred_fallthru
      _
    // Predicated region
    $region38: #{tpu_custom_call.1} parent=1 // pred_check
      _
    $region39: #{tpu_custom_call.1} parent=1 // pred_check_branch
      %684 = sbr.rel (0) target = $region41
    $region40: #{tpu_custom_call.1} parent=1 // pred_region
      %686 = dma.done [#allocation5], 32
    $region41: #{tpu_custom_call.1} parent=1 // pred_fallthru
      _
    %687 = vsyncpa [#allocation5], 1

</llo_original>
